<compile_context>
chip_gen: v6e
topology: v6e:2x2x1
jax: 0.10.0
libtpu: 0.0.40
codegen_flags: <defaults>
</compile_context>

<pallas_src>
import functools

import jax
import jax.numpy as jnp
import numpy as np
from jax.experimental import pallas as pl
from jax.experimental.pallas import tpu as pltpu


# ----------------------------------------------------------------------------
# Fused kernel: conv_high + conv_low(x2) + segment head + upsample + add
# ----------------------------------------------------------------------------
def _sffm_kernel(xh_ref, xl_ref, mh_ref, ml_ref,
                 wh_ref, bh_ref, wl0_ref, bl0_ref, wl1_ref, bl1_ref,
                 wk_ref, bk_ref, up_ref,
                 out_ref, seg_ref, *, Hh, Wh, Hl, Wl):
    # xh_ref : (1, Ch, Hh*Wh)   x_high, channel-major (lane-dense)
    # xl_ref : (1, Cl, Hl*Wl)   x_low
    # mh_ref : (9, Hh*Wh)       per-tap border masks (high-res grid)
    # ml_ref : (9, Hl*Wl)       per-tap border masks (low-res grid)
    # w*_ref : (Cout, 9*Cin)    folded conv+BN weights (transposed im2col)
    # b*_ref : (Cout, 1)        folded BN bias
    # wk_ref : (K, Ch), bk_ref: (K, 1)   class_feature_k (1x1 projection)
    # up_ref : (Hl*Wl, Hh*Wh)   constant align_corners bilinear interp matrix
    # out_ref: (1, Ch, Hh*Wh)   fused output, channel-major
    # seg_ref: (1, K, Hl*Wl)    segment logits, channel-major

    def conv3x3_bn_relu(x_cm, w_t, b, mask_ref, H, W):
        # 3x3 conv: nine shifted (Cin, H*W) slabs stacked on the SUBLANE axis
        # -> one deep-contraction MXU dot, spatial on lanes the whole way.
        n = H * W
        slabs = []
        for ky in range(3):
            for kx in range(3):
                d = (ky - 1) * W + (kx - 1)          # flat source offset
                if d == 0:
                    slabs.append(x_cm)               # centre tap: no mask
                else:
                    t = ky * 3 + kx
                    s = pltpu.roll(x_cm, (-d) % n, 1)        # XLU rotate
                    slabs.append(s * mask_ref[t:t + 1, :])   # zero the border
        patches = jnp.concatenate(slabs, axis=0)             # (9*Cin, H*W)
        y = jnp.dot(w_t, patches, preferred_element_type=jnp.float32)
        return jnp.maximum(y + b, 0.0)                       # (Cout, H*W)

    # High branch: conv_high
    yh = conv3x3_bn_relu(xh_ref[0], wh_ref[...], bh_ref[...], mh_ref, Hh, Wh)
    # Low branch: conv_low[0] -> conv_low[1]
    y0 = conv3x3_bn_relu(xl_ref[0], wl0_ref[...], bl0_ref[...], ml_ref, Hl, Wl)
    y1 = conv3x3_bn_relu(y0, wl1_ref[...], bl1_ref[...], ml_ref, Hl, Wl)

    # segment = class_feature_k(x_low.flatten(2))  (1x1 projection), already
    # channel-major so it stores without any transpose.
    seg_ref[0] = (jnp.dot(wk_ref[...], y1, preferred_element_type=jnp.float32)
                  + bk_ref[...])

    # SPPFFM (placeholder): align_corners bilinear upsample as one MXU dot with
    # the constant interpolation matrix, fused with the residual add.
    out_ref[0] = (jnp.dot(y1, up_ref[...], preferred_element_type=jnp.float32)
                  + yh)


# ----------------------------------------------------------------------------
# Host-side parameter / constant prep
# ----------------------------------------------------------------------------
def _fold_bn_cm(w, gamma, beta, mean, var, eps=1e-5):
    # w: (3, 3, Cin, Cout). Fold inference BN; row order (ky, kx, cin) matches
    # the kernel's slab stacking; returned transposed -> (Cout, 9*Cin).
    cin, cout = w.shape[2], w.shape[3]
    scale = gamma / jnp.sqrt(var + eps)
    w_eff = (w * scale[None, None, None, :]).reshape(9 * cin, cout)
    b_eff = (beta - mean * scale).reshape(cout, 1)
    return w_eff.T.astype(jnp.float32), b_eff.astype(jnp.float32)


def _tap_masks(H, W):
    # (9, H*W) float masks: 1.0 where the 3x3 tap (ky, kx) stays in-bounds.
    ho, wo = np.divmod(np.arange(H * W), W)
    m = np.zeros((9, H * W), np.float32)
    for ky in range(3):
        for kx in range(3):
            ok = ((ho + ky - 1 >= 0) & (ho + ky - 1 < H)
                  & (wo + kx - 1 >= 0) & (wo + kx - 1 < W))
            m[ky * 3 + kx] = ok.astype(np.float32)
    return jnp.asarray(m)


def _interp_matrix(n_out, n_in):
    # (n_out, n_in) align_corners=True 1-D bilinear interpolation matrix.
    if n_in == 1:
        return jnp.ones((n_out, 1), jnp.float32)
    src = jnp.linspace(0.0, n_in - 1.0, n_out)
    i0 = jnp.floor(src).astype(jnp.int32)
    i1 = jnp.clip(i0 + 1, 0, n_in - 1)
    w = (src - i0.astype(jnp.float32)).astype(jnp.float32)
    return (jax.nn.one_hot(i0, n_in, dtype=jnp.float32) * (1.0 - w)[:, None]
            + jax.nn.one_hot(i1, n_in, dtype=jnp.float32) * w[:, None])


def _bilinear_matrix(hl, wl, hh, wh):
    # Combined 2-D interp matrix M so that up_cm = y_low_cm @ M.
    uy = _interp_matrix(hh, hl)                       # (Hh, Hl)
    ux = _interp_matrix(wh, wl)                       # (Wh, Wl)
    m = jnp.einsum("Ii,Jj->ijIJ", uy, ux).reshape(hl * wl, hh * wh)
    return m.astype(jnp.float32)


# ----------------------------------------------------------------------------
# Public forward (NCHW in / NCHW out, like the PyTorch module)
# ----------------------------------------------------------------------------
def sffm_forward(x_high_nchw, x_low_nchw, params):
    N, Ch, Hh, Wh = x_high_nchw.shape
    _, Cl, Hl, Wl = x_low_nchw.shape
    Cm = params["conv_low0"][0].shape[-1]
    K = params["cls_k_w"].shape[-1]
    nh, nl = Hh * Wh, Hl * Wl

    # No NCHW->NHWC transpose (pure reshape): channel-major (N, C, H*W) slabs.
    xh = x_high_nchw.reshape(N, Ch, nh).astype(jnp.float32)
    xl = x_low_nchw.reshape(N, Cl, nl).astype(jnp.float32)

    wh, bh = _fold_bn_cm(*params["conv_high"])
    wl0, bl0 = _fold_bn_cm(*params["conv_low0"])
    wl1, bl1 = _fold_bn_cm(*params["conv_low1"])
    wk_t = params["cls_k_w"].T.astype(jnp.float32)                 # (K, Ch)
    bk = params["cls_k_b"].reshape(K, 1).astype(jnp.float32)       # (K, 1)
    up_m = _bilinear_matrix(Hl, Wl, Hh, Wh)                        # (nl, nh)
    mh = _tap_masks(Hh, Wh)                                        # (9, nh)
    ml = _tap_masks(Hl, Wl)                                        # (9, nl)

    flops = 2 * N * (nh * 9 * Ch * Ch + nl * 9 * Cl * Cm + nl * 9 * Cm * Ch
                     + nl * K * Ch + Ch * nl * nh)
    bytes_accessed = 4 * (N * (2 * Ch * nh + Cl * nl + K * nl)
                          + wh.size + wl0.size + wl1.size + wk_t.size
                          + up_m.size + mh.size + ml.size
                          + bh.size + bl0.size + bl1.size + bk.size)

    kernel = functools.partial(_sffm_kernel, Hh=Hh, Wh=Wh, Hl=Hl, Wl=Wl)

    out_flat, seg_flat = pl.pallas_call(
        kernel,
        out_shape=(
            jax.ShapeDtypeStruct((N, Ch, nh), jnp.float32),
            jax.ShapeDtypeStruct((N, K, nl), jnp.float32),
        ),
        grid=(N,),
        in_specs=[
            pl.BlockSpec((1, Ch, nh), lambda n: (n, 0, 0)),
            pl.BlockSpec((1, Cl, nl), lambda n: (n, 0, 0)),
            pl.BlockSpec((9, nh), lambda n: (0, 0)),
            pl.BlockSpec((9, nl), lambda n: (0, 0)),
            pl.BlockSpec((Ch, 9 * Ch), lambda n: (0, 0)),
            pl.BlockSpec((Ch, 1), lambda n: (0, 0)),
            pl.BlockSpec((Cm, 9 * Cl), lambda n: (0, 0)),
            pl.BlockSpec((Cm, 1), lambda n: (0, 0)),
            pl.BlockSpec((Ch, 9 * Cm), lambda n: (0, 0)),
            pl.BlockSpec((Ch, 1), lambda n: (0, 0)),
            pl.BlockSpec((K, Ch), lambda n: (0, 0)),
            pl.BlockSpec((K, 1), lambda n: (0, 0)),
            pl.BlockSpec((nl, nh), lambda n: (0, 0)),
        ],
        out_specs=(
            pl.BlockSpec((1, Ch, nh), lambda n: (n, 0, 0)),
            pl.BlockSpec((1, K, nl), lambda n: (n, 0, 0)),
        ),
        compiler_params=pltpu.CompilerParams(
            dimension_semantics=("parallel",)),
        cost_estimate=pl.CostEstimate(flops=flops, transcendentals=0,
                                      bytes_accessed=bytes_accessed),
    )(xh, xl, mh, ml, wh, bh, wl0, bl0, wl1, bl1, wk_t, bk, up_m)

    # Channel-major flat -> NCHW (pure reshape, no transpose).
    out = out_flat.reshape(N, Ch, Hh, Wh)
    segment = seg_flat.reshape(N, K, Hl, Wl)
    # TODO(synk): SPCFFM internal definition (uses class_feature_k/v) is not
    # provided in the snippet; the fused output is passed through unchanged.
    return out, segment


# ----------------------------------------------------------------------------
# Parameters
# ----------------------------------------------------------------------------
def init_params(key, high_c, low_c, num_classes):
    mid_c = max(low_c // 2, high_c)
    ks = jax.random.split(key, 8)

    def conv_p(k, cin, cout):
        k1, k2, k3 = jax.random.split(k, 3)
        w = jax.random.normal(k1, (3, 3, cin, cout), jnp.float32) / jnp.sqrt(9.0 * cin)
        gamma = 1.0 + 0.1 * jax.random.normal(k2, (cout,), jnp.float32)
        beta = 0.05 * jax.random.normal(k3, (cout,), jnp.float32)
        mean = 0.02 * jnp.arange(cout, dtype=jnp.float32)
        var = jnp.ones((cout,), jnp.float32) + 0.01 * jnp.arange(cout, dtype=jnp.float32)
        return (w, gamma, beta, mean, var)

    return {
        "conv_high": conv_p(ks[0], high_c, high_c),
        "conv_low0": conv_p(ks[1], low_c, mid_c),
        "conv_low1": conv_p(ks[2], mid_c, high_c),
        # class_feature_k ~ Conv1d(high_c, num_classes, kernel_size=1)
        "cls_k_w": jax.random.normal(ks[3], (high_c, num_classes), jnp.float32)
        / jnp.sqrt(float(high_c)),
        "cls_k_b": 0.01 * jax.random.normal(ks[4], (num_classes,), jnp.float32),
        # class_feature_v exists in the PyTorch module (used inside SPCFFM); unused here.
        "cls_v_w": jax.random.normal(ks[5], (num_classes, high_c), jnp.float32)
        / jnp.sqrt(float(num_classes)),
    }


# ----------------------------------------------------------------------------
# Pure-JAX reference (for correctness check)
# ----------------------------------------------------------------------------
def _ref_conv_bn_relu(x, w, gamma, beta, mean, var, eps=1e-5):
    y = jax.lax.conv_general_dilated(
        x, w, (1, 1), "SAME", dimension_numbers=("NHWC", "HWIO", "NHWC")
    )
    scale = gamma / jnp.sqrt(var + eps)
    return jnp.maximum(y * scale + (beta - mean * scale), 0.0)


def _ref_bilinear_up_align_corners(x, oh, ow):
    n, h, w, c = x.shape
    if h == oh and w == ow:
        return x
    ys = jnp.linspace(0.0, h - 1.0, oh)
    xs = jnp.linspace(0.0, w - 1.0, ow)
    y0 = jnp.floor(ys).astype(jnp.int32)
    y1 = jnp.clip(y0 + 1, 0, h - 1)
    wy = (ys - y0.astype(jnp.float32))[None, :, None, None]
    x0 = jnp.floor(xs).astype(jnp.int32)
    x1 = jnp.clip(x0 + 1, 0, w - 1)
    wx = (xs - x0.astype(jnp.float32))[None, None, :, None]
    g = lambda yi, xi: x[:, yi][:, :, xi]
    top = g(y0, x0) * (1.0 - wx) + g(y0, x1) * wx
    bot = g(y1, x0) * (1.0 - wx) + g(y1, x1) * wx
    return top * (1.0 - wy) + bot * wy


def ref_forward(x_high_nchw, x_low_nchw, params):
    x_high = jnp.transpose(x_high_nchw, (0, 2, 3, 1)).astype(jnp.float32)
    x_low = jnp.transpose(x_low_nchw, (0, 2, 3, 1)).astype(jnp.float32)
    x_high = _ref_conv_bn_relu(x_high, *params["conv_high"])
    x_low = _ref_conv_bn_relu(x_low, *params["conv_low0"])
    x_low = _ref_conv_bn_relu(x_low, *params["conv_low1"])
    segment = jnp.einsum("nhwc,ck->nhwk", x_low, params["cls_k_w"]) + params["cls_k_b"]
    x_low_up = _ref_bilinear_up_align_corners(x_low, x_high.shape[1], x_high.shape[2])
    out = x_high + x_low_up
    return jnp.transpose(out, (0, 3, 1, 2)), jnp.transpose(segment, (0, 3, 1, 2))


# ----------------------------------------------------------------------------
if __name__ == "__main__":
    key = jax.random.PRNGKey(0)
    k_xh, k_xl, k_p = jax.random.split(key, 3)

    N, HIGH_C, LOW_C, NUM_CLS = 2, 8, 16, 4
    Hh = Wh = 16   # high-resolution branch
    Hl = Wl = 8    # low-resolution branch

    x_high = jax.random.normal(k_xh, (N, HIGH_C, Hh, Wh), jnp.float32)
    x_low = jax.random.normal(k_xl, (N, LOW_C, Hl, Wl), jnp.float32)
    params = init_params(k_p, HIGH_C, LOW_C, NUM_CLS)

    out, segment = jax.jit(sffm_forward)(x_high, x_low, params)
    out = jax.block_until_ready(out)
    segment = jax.block_until_ready(segment)

    ref_out, ref_seg = ref_forward(x_high, x_low, params)

    assert out.shape == (N, HIGH_C, Hh, Wh), out.shape
    assert segment.shape == (N, NUM_CLS, Hl, Wl), segment.shape
    assert bool(jnp.all(jnp.isfinite(out))) and bool(jnp.all(jnp.isfinite(segment)))
    assert jnp.allclose(out, ref_out, atol=1e-4, rtol=1e-4), \
        float(jnp.max(jnp.abs(out - ref_out)))
    assert jnp.allclose(segment, ref_seg, atol=1e-4, rtol=1e-4), \
        float(jnp.max(jnp.abs(segment - ref_seg)))

    print("KERNEL_OK")
</pallas_src>

<mosaic_0001>
module attributes {stable_mosaic.version = 11 : i64} {
  func.func @_sffm_kernel(%arg0: i32, %arg1: memref<1x8x256xf32, #tpu.memory_space<vmem>>, %arg2: memref<1x16x64xf32, #tpu.memory_space<vmem>>, %arg3: memref<9x256xf32, #tpu.memory_space<vmem>>, %arg4: memref<9x64xf32, #tpu.memory_space<vmem>>, %arg5: memref<8x72xf32, #tpu.memory_space<vmem>>, %arg6: memref<8x1xf32, #tpu.memory_space<vmem>>, %arg7: memref<8x144xf32, #tpu.memory_space<vmem>>, %arg8: memref<8x1xf32, #tpu.memory_space<vmem>>, %arg9: memref<8x72xf32, #tpu.memory_space<vmem>>, %arg10: memref<8x1xf32, #tpu.memory_space<vmem>>, %arg11: memref<4x8xf32, #tpu.memory_space<vmem>>, %arg12: memref<4x1xf32, #tpu.memory_space<vmem>>, %arg13: memref<64x256xf32, #tpu.memory_space<vmem>>, %arg14: memref<1x8x256xf32, #tpu.memory_space<vmem>>, %arg15: memref<1x4x64xf32, #tpu.memory_space<vmem>>) attributes {dimension_semantics = [#tpu.dimension_semantics<parallel>], iteration_bounds = array<i64: 2>, scalar_prefetch = 0 : i64, scratch_operands = 0 : i64, tpu.core_type = #tpu.core_type<tc>, window_params = [{transform_indices = @transform_0, window_bounds = array<i64: 1, 8, 256>}, {transform_indices = @transform_1, window_bounds = array<i64: 1, 16, 64>}, {pipeline_mode = #tpu.pipeline_mode<synchronous>, transform_indices = @transform_2, window_bounds = array<i64: 9, 256>}, {pipeline_mode = #tpu.pipeline_mode<synchronous>, transform_indices = @transform_3, window_bounds = array<i64: 9, 64>}, {pipeline_mode = #tpu.pipeline_mode<synchronous>, transform_indices = @transform_4, window_bounds = array<i64: 8, 72>}, {pipeline_mode = #tpu.pipeline_mode<synchronous>, transform_indices = @transform_5, window_bounds = array<i64: 8, 1>}, {pipeline_mode = #tpu.pipeline_mode<synchronous>, transform_indices = @transform_6, window_bounds = array<i64: 8, 144>}, {pipeline_mode = #tpu.pipeline_mode<synchronous>, transform_indices = @transform_7, window_bounds = array<i64: 8, 1>}, {pipeline_mode = #tpu.pipeline_mode<synchronous>, transform_indices = @transform_8, window_bounds = array<i64: 8, 72>}, {pipeline_mode = #tpu.pipeline_mode<synchronous>, transform_indices = @transform_9, window_bounds = array<i64: 8, 1>}, {pipeline_mode = #tpu.pipeline_mode<synchronous>, transform_indices = @transform_10, window_bounds = array<i64: 4, 8>}, {pipeline_mode = #tpu.pipeline_mode<synchronous>, transform_indices = @transform_11, window_bounds = array<i64: 4, 1>}, {pipeline_mode = #tpu.pipeline_mode<synchronous>, transform_indices = @transform_12, window_bounds = array<i64: 64, 256>}, {transform_indices = @transform_13, window_bounds = array<i64: 1, 8, 256>}, {transform_indices = @transform_14, window_bounds = array<i64: 1, 4, 64>}]} {
    %c0 = arith.constant 0 : index
    %c0_0 = arith.constant 0 : index
    %c0_1 = arith.constant 0 : index
    %0 = vector.load %arg1[%c0, %c0_0, %c0_1] : memref<1x8x256xf32, #tpu.memory_space<vmem>>, vector<1x8x256xf32>
    %1 = vector.shape_cast %0 : vector<1x8x256xf32> to vector<8x256xf32>
    %c0_2 = arith.constant 0 : index
    %c0_3 = arith.constant 0 : index
    %2 = vector.load %arg5[%c0_2, %c0_3] : memref<8x72xf32, #tpu.memory_space<vmem>>, vector<8x72xf32>
    %c0_4 = arith.constant 0 : index
    %c0_5 = arith.constant 0 : index
    %3 = vector.load %arg6[%c0_4, %c0_5] : memref<8x1xf32, #tpu.memory_space<vmem>>, vector<8x1xf32>
    %c17_i32 = arith.constant 17 : i32
    %4 = tpu.dynamic_rotate %1 by %c17_i32 dim 1 : vector<8x256xf32>, i32 -> vector<8x256xf32>
    %c0_6 = arith.constant 0 : index
    %c0_7 = arith.constant 0 : index
    %5 = vector.load %arg3[%c0_6, %c0_7] : memref<9x256xf32, #tpu.memory_space<vmem>>, vector<1x256xf32>
    %6 = vector.broadcast %5 : vector<1x256xf32> to vector<8x256xf32>
    %7 = arith.mulf %4, %6 : vector<8x256xf32>
    %c16_i32 = arith.constant 16 : i32
    %8 = tpu.dynamic_rotate %1 by %c16_i32 dim 1 : vector<8x256xf32>, i32 -> vector<8x256xf32>
    %c1 = arith.constant 1 : index
    %c0_8 = arith.constant 0 : index
    %9 = vector.load %arg3[%c1, %c0_8] : memref<9x256xf32, #tpu.memory_space<vmem>>, vector<1x256xf32>
    %10 = vector.broadcast %9 : vector<1x256xf32> to vector<8x256xf32>
    %11 = arith.mulf %8, %10 : vector<8x256xf32>
    %c15_i32 = arith.constant 15 : i32
    %12 = tpu.dynamic_rotate %1 by %c15_i32 dim 1 : vector<8x256xf32>, i32 -> vector<8x256xf32>
    %c2 = arith.constant 2 : index
    %c0_9 = arith.constant 0 : index
    %13 = vector.load %arg3[%c2, %c0_9] : memref<9x256xf32, #tpu.memory_space<vmem>>, vector<1x256xf32>
    %14 = vector.broadcast %13 : vector<1x256xf32> to vector<8x256xf32>
    %15 = arith.mulf %12, %14 : vector<8x256xf32>
    %c1_i32 = arith.constant 1 : i32
    %16 = tpu.dynamic_rotate %1 by %c1_i32 dim 1 : vector<8x256xf32>, i32 -> vector<8x256xf32>
    %c3 = arith.constant 3 : index
    %c0_10 = arith.constant 0 : index
    %17 = vector.load %arg3[%c3, %c0_10] : memref<9x256xf32, #tpu.memory_space<vmem>>, vector<1x256xf32>
    %18 = vector.broadcast %17 : vector<1x256xf32> to vector<8x256xf32>
    %19 = arith.mulf %16, %18 : vector<8x256xf32>
    %c255_i32 = arith.constant 255 : i32
    %20 = tpu.dynamic_rotate %1 by %c255_i32 dim 1 : vector<8x256xf32>, i32 -> vector<8x256xf32>
    %c5 = arith.constant 5 : index
    %c0_11 = arith.constant 0 : index
    %21 = vector.load %arg3[%c5, %c0_11] : memref<9x256xf32, #tpu.memory_space<vmem>>, vector<1x256xf32>
    %22 = vector.broadcast %21 : vector<1x256xf32> to vector<8x256xf32>
    %23 = arith.mulf %20, %22 : vector<8x256xf32>
    %c241_i32 = arith.constant 241 : i32
    %24 = tpu.dynamic_rotate %1 by %c241_i32 dim 1 : vector<8x256xf32>, i32 -> vector<8x256xf32>
    %c6 = arith.constant 6 : index
    %c0_12 = arith.constant 0 : index
    %25 = vector.load %arg3[%c6, %c0_12] : memref<9x256xf32, #tpu.memory_space<vmem>>, vector<1x256xf32>
    %26 = vector.broadcast %25 : vector<1x256xf32> to vector<8x256xf32>
    %27 = arith.mulf %24, %26 : vector<8x256xf32>
    %c240_i32 = arith.constant 240 : i32
    %28 = tpu.dynamic_rotate %1 by %c240_i32 dim 1 : vector<8x256xf32>, i32 -> vector<8x256xf32>
    %c7 = arith.constant 7 : index
    %c0_13 = arith.constant 0 : index
    %29 = vector.load %arg3[%c7, %c0_13] : memref<9x256xf32, #tpu.memory_space<vmem>>, vector<1x256xf32>
    %30 = vector.broadcast %29 : vector<1x256xf32> to vector<8x256xf32>
    %31 = arith.mulf %28, %30 : vector<8x256xf32>
    %c239_i32 = arith.constant 239 : i32
    %32 = tpu.dynamic_rotate %1 by %c239_i32 dim 1 : vector<8x256xf32>, i32 -> vector<8x256xf32>
    %c8 = arith.constant 8 : index
    %c0_14 = arith.constant 0 : index
    %33 = vector.load %arg3[%c8, %c0_14] : memref<9x256xf32, #tpu.memory_space<vmem>>, vector<1x256xf32>
    %34 = vector.broadcast %33 : vector<1x256xf32> to vector<8x256xf32>
    %35 = arith.mulf %32, %34 : vector<8x256xf32>
    %36 = tpu.concatenate %7, %11, %15, %19, %1, %23, %27, %31, %35 in 0 : vector<8x256xf32>, vector<8x256xf32>, vector<8x256xf32>, vector<8x256xf32>, vector<8x256xf32>, vector<8x256xf32>, vector<8x256xf32>, vector<8x256xf32>, vector<8x256xf32> -> vector<72x256xf32>
    %cst = arith.constant dense<0.000000e+00> : vector<8x256xf32>
    %37 = tpu.matmul %2, %36, %cst {dimension_numbers = #tpu.dot_dimension_numbers<[1], [0], [0], [1], [0, 0, 1, 1], [], []>} : vector<8x72xf32>, vector<72x256xf32>, vector<8x256xf32> -> vector<8x256xf32>
    %38 = vector.broadcast %3 : vector<8x1xf32> to vector<8x256xf32>
    %39 = arith.addf %37, %38 : vector<8x256xf32>
    %cst_15 = arith.constant 0.000000e+00 : f32
    %40 = vector.broadcast %cst_15 : f32 to vector<8x256xf32>
    %41 = arith.maximumf %39, %40 : vector<8x256xf32>
    %c0_16 = arith.constant 0 : index
    %c0_17 = arith.constant 0 : index
    %c0_18 = arith.constant 0 : index
    %42 = vector.load %arg2[%c0_16, %c0_17, %c0_18] : memref<1x16x64xf32, #tpu.memory_space<vmem>>, vector<1x16x64xf32>
    %43 = vector.shape_cast %42 : vector<1x16x64xf32> to vector<16x64xf32>
    %c0_19 = arith.constant 0 : index
    %c0_20 = arith.constant 0 : index
    %44 = vector.load %arg7[%c0_19, %c0_20] : memref<8x144xf32, #tpu.memory_space<vmem>>, vector<8x144xf32>
    %c0_21 = arith.constant 0 : index
    %c0_22 = arith.constant 0 : index
    %45 = vector.load %arg8[%c0_21, %c0_22] : memref<8x1xf32, #tpu.memory_space<vmem>>, vector<8x1xf32>
    %c9_i32 = arith.constant 9 : i32
    %46 = tpu.dynamic_rotate %43 by %c9_i32 dim 1 : vector<16x64xf32>, i32 -> vector<16x64xf32>
    %c0_23 = arith.constant 0 : index
    %c0_24 = arith.constant 0 : index
    %47 = vector.load %arg4[%c0_23, %c0_24] : memref<9x64xf32, #tpu.memory_space<vmem>>, vector<1x64xf32>
    %48 = vector.broadcast %47 : vector<1x64xf32> to vector<16x64xf32>
    %49 = arith.mulf %46, %48 : vector<16x64xf32>
    %c8_i32 = arith.constant 8 : i32
    %50 = tpu.dynamic_rotate %43 by %c8_i32 dim 1 : vector<16x64xf32>, i32 -> vector<16x64xf32>
    %c1_25 = arith.constant 1 : index
    %c0_26 = arith.constant 0 : index
    %51 = vector.load %arg4[%c1_25, %c0_26] : memref<9x64xf32, #tpu.memory_space<vmem>>, vector<1x64xf32>
    %52 = vector.broadcast %51 : vector<1x64xf32> to vector<16x64xf32>
    %53 = arith.mulf %50, %52 : vector<16x64xf32>
    %c7_i32 = arith.constant 7 : i32
    %54 = tpu.dynamic_rotate %43 by %c7_i32 dim 1 : vector<16x64xf32>, i32 -> vector<16x64xf32>
    %c2_27 = arith.constant 2 : index
    %c0_28 = arith.constant 0 : index
    %55 = vector.load %arg4[%c2_27, %c0_28] : memref<9x64xf32, #tpu.memory_space<vmem>>, vector<1x64xf32>
    %56 = vector.broadcast %55 : vector<1x64xf32> to vector<16x64xf32>
    %57 = arith.mulf %54, %56 : vector<16x64xf32>
    %c1_i32_29 = arith.constant 1 : i32
    %58 = tpu.dynamic_rotate %43 by %c1_i32_29 dim 1 : vector<16x64xf32>, i32 -> vector<16x64xf32>
    %c3_30 = arith.constant 3 : index
    %c0_31 = arith.constant 0 : index
    %59 = vector.load %arg4[%c3_30, %c0_31] : memref<9x64xf32, #tpu.memory_space<vmem>>, vector<1x64xf32>
    %60 = vector.broadcast %59 : vector<1x64xf32> to vector<16x64xf32>
    %61 = arith.mulf %58, %60 : vector<16x64xf32>
    %c63_i32 = arith.constant 63 : i32
    %62 = tpu.dynamic_rotate %43 by %c63_i32 dim 1 : vector<16x64xf32>, i32 -> vector<16x64xf32>
    %c5_32 = arith.constant 5 : index
    %c0_33 = arith.constant 0 : index
    %63 = vector.load %arg4[%c5_32, %c0_33] : memref<9x64xf32, #tpu.memory_space<vmem>>, vector<1x64xf32>
    %64 = vector.broadcast %63 : vector<1x64xf32> to vector<16x64xf32>
    %65 = arith.mulf %62, %64 : vector<16x64xf32>
    %c57_i32 = arith.constant 57 : i32
    %66 = tpu.dynamic_rotate %43 by %c57_i32 dim 1 : vector<16x64xf32>, i32 -> vector<16x64xf32>
    %c6_34 = arith.constant 6 : index
    %c0_35 = arith.constant 0 : index
    %67 = vector.load %arg4[%c6_34, %c0_35] : memref<9x64xf32, #tpu.memory_space<vmem>>, vector<1x64xf32>
    %68 = vector.broadcast %67 : vector<1x64xf32> to vector<16x64xf32>
    %69 = arith.mulf %66, %68 : vector<16x64xf32>
    %c56_i32 = arith.constant 56 : i32
    %70 = tpu.dynamic_rotate %43 by %c56_i32 dim 1 : vector<16x64xf32>, i32 -> vector<16x64xf32>
    %c7_36 = arith.constant 7 : index
    %c0_37 = arith.constant 0 : index
    %71 = vector.load %arg4[%c7_36, %c0_37] : memref<9x64xf32, #tpu.memory_space<vmem>>, vector<1x64xf32>
    %72 = vector.broadcast %71 : vector<1x64xf32> to vector<16x64xf32>
    %73 = arith.mulf %70, %72 : vector<16x64xf32>
    %c55_i32 = arith.constant 55 : i32
    %74 = tpu.dynamic_rotate %43 by %c55_i32 dim 1 : vector<16x64xf32>, i32 -> vector<16x64xf32>
    %c8_38 = arith.constant 8 : index
    %c0_39 = arith.constant 0 : index
    %75 = vector.load %arg4[%c8_38, %c0_39] : memref<9x64xf32, #tpu.memory_space<vmem>>, vector<1x64xf32>
    %76 = vector.broadcast %75 : vector<1x64xf32> to vector<16x64xf32>
    %77 = arith.mulf %74, %76 : vector<16x64xf32>
    %78 = tpu.concatenate %49, %53, %57, %61, %43, %65, %69, %73, %77 in 0 : vector<16x64xf32>, vector<16x64xf32>, vector<16x64xf32>, vector<16x64xf32>, vector<16x64xf32>, vector<16x64xf32>, vector<16x64xf32>, vector<16x64xf32>, vector<16x64xf32> -> vector<144x64xf32>
    %cst_40 = arith.constant dense<0.000000e+00> : vector<8x64xf32>
    %79 = tpu.matmul %44, %78, %cst_40 {dimension_numbers = #tpu.dot_dimension_numbers<[1], [0], [0], [1], [0, 0, 1, 1], [], []>} : vector<8x144xf32>, vector<144x64xf32>, vector<8x64xf32> -> vector<8x64xf32>
    %80 = vector.broadcast %45 : vector<8x1xf32> to vector<8x64xf32>
    %81 = arith.addf %79, %80 : vector<8x64xf32>
    %cst_41 = arith.constant 0.000000e+00 : f32
    %82 = vector.broadcast %cst_41 : f32 to vector<8x64xf32>
    %83 = arith.maximumf %81, %82 : vector<8x64xf32>
    %c0_42 = arith.constant 0 : index
    %c0_43 = arith.constant 0 : index
    %84 = vector.load %arg9[%c0_42, %c0_43] : memref<8x72xf32, #tpu.memory_space<vmem>>, vector<8x72xf32>
    %c0_44 = arith.constant 0 : index
    %c0_45 = arith.constant 0 : index
    %85 = vector.load %arg10[%c0_44, %c0_45] : memref<8x1xf32, #tpu.memory_space<vmem>>, vector<8x1xf32>
    %c9_i32_46 = arith.constant 9 : i32
    %86 = tpu.dynamic_rotate %83 by %c9_i32_46 dim 1 : vector<8x64xf32>, i32 -> vector<8x64xf32>
    %c0_47 = arith.constant 0 : index
    %c0_48 = arith.constant 0 : index
    %87 = vector.load %arg4[%c0_47, %c0_48] : memref<9x64xf32, #tpu.memory_space<vmem>>, vector<1x64xf32>
    %88 = vector.broadcast %87 : vector<1x64xf32> to vector<8x64xf32>
    %89 = arith.mulf %86, %88 : vector<8x64xf32>
    %c8_i32_49 = arith.constant 8 : i32
    %90 = tpu.dynamic_rotate %83 by %c8_i32_49 dim 1 : vector<8x64xf32>, i32 -> vector<8x64xf32>
    %c1_50 = arith.constant 1 : index
    %c0_51 = arith.constant 0 : index
    %91 = vector.load %arg4[%c1_50, %c0_51] : memref<9x64xf32, #tpu.memory_space<vmem>>, vector<1x64xf32>
    %92 = vector.broadcast %91 : vector<1x64xf32> to vector<8x64xf32>
    %93 = arith.mulf %90, %92 : vector<8x64xf32>
    %c7_i32_52 = arith.constant 7 : i32
    %94 = tpu.dynamic_rotate %83 by %c7_i32_52 dim 1 : vector<8x64xf32>, i32 -> vector<8x64xf32>
    %c2_53 = arith.constant 2 : index
    %c0_54 = arith.constant 0 : index
    %95 = vector.load %arg4[%c2_53, %c0_54] : memref<9x64xf32, #tpu.memory_space<vmem>>, vector<1x64xf32>
    %96 = vector.broadcast %95 : vector<1x64xf32> to vector<8x64xf32>
    %97 = arith.mulf %94, %96 : vector<8x64xf32>
    %c1_i32_55 = arith.constant 1 : i32
    %98 = tpu.dynamic_rotate %83 by %c1_i32_55 dim 1 : vector<8x64xf32>, i32 -> vector<8x64xf32>
    %c3_56 = arith.constant 3 : index
    %c0_57 = arith.constant 0 : index
    %99 = vector.load %arg4[%c3_56, %c0_57] : memref<9x64xf32, #tpu.memory_space<vmem>>, vector<1x64xf32>
    %100 = vector.broadcast %99 : vector<1x64xf32> to vector<8x64xf32>
    %101 = arith.mulf %98, %100 : vector<8x64xf32>
    %c63_i32_58 = arith.constant 63 : i32
    %102 = tpu.dynamic_rotate %83 by %c63_i32_58 dim 1 : vector<8x64xf32>, i32 -> vector<8x64xf32>
    %c5_59 = arith.constant 5 : index
    %c0_60 = arith.constant 0 : index
    %103 = vector.load %arg4[%c5_59, %c0_60] : memref<9x64xf32, #tpu.memory_space<vmem>>, vector<1x64xf32>
    %104 = vector.broadcast %103 : vector<1x64xf32> to vector<8x64xf32>
    %105 = arith.mulf %102, %104 : vector<8x64xf32>
    %c57_i32_61 = arith.constant 57 : i32
    %106 = tpu.dynamic_rotate %83 by %c57_i32_61 dim 1 : vector<8x64xf32>, i32 -> vector<8x64xf32>
    %c6_62 = arith.constant 6 : index
    %c0_63 = arith.constant 0 : index
    %107 = vector.load %arg4[%c6_62, %c0_63] : memref<9x64xf32, #tpu.memory_space<vmem>>, vector<1x64xf32>
    %108 = vector.broadcast %107 : vector<1x64xf32> to vector<8x64xf32>
    %109 = arith.mulf %106, %108 : vector<8x64xf32>
    %c56_i32_64 = arith.constant 56 : i32
    %110 = tpu.dynamic_rotate %83 by %c56_i32_64 dim 1 : vector<8x64xf32>, i32 -> vector<8x64xf32>
    %c7_65 = arith.constant 7 : index
    %c0_66 = arith.constant 0 : index
    %111 = vector.load %arg4[%c7_65, %c0_66] : memref<9x64xf32, #tpu.memory_space<vmem>>, vector<1x64xf32>
    %112 = vector.broadcast %111 : vector<1x64xf32> to vector<8x64xf32>
    %113 = arith.mulf %110, %112 : vector<8x64xf32>
    %c55_i32_67 = arith.constant 55 : i32
    %114 = tpu.dynamic_rotate %83 by %c55_i32_67 dim 1 : vector<8x64xf32>, i32 -> vector<8x64xf32>
    %c8_68 = arith.constant 8 : index
    %c0_69 = arith.constant 0 : index
    %115 = vector.load %arg4[%c8_68, %c0_69] : memref<9x64xf32, #tpu.memory_space<vmem>>, vector<1x64xf32>
    %116 = vector.broadcast %115 : vector<1x64xf32> to vector<8x64xf32>
    %117 = arith.mulf %114, %116 : vector<8x64xf32>
    %118 = tpu.concatenate %89, %93, %97, %101, %83, %105, %109, %113, %117 in 0 : vector<8x64xf32>, vector<8x64xf32>, vector<8x64xf32>, vector<8x64xf32>, vector<8x64xf32>, vector<8x64xf32>, vector<8x64xf32>, vector<8x64xf32>, vector<8x64xf32> -> vector<72x64xf32>
    %cst_70 = arith.constant dense<0.000000e+00> : vector<8x64xf32>
    %119 = tpu.matmul %84, %118, %cst_70 {dimension_numbers = #tpu.dot_dimension_numbers<[1], [0], [0], [1], [0, 0, 1, 1], [], []>} : vector<8x72xf32>, vector<72x64xf32>, vector<8x64xf32> -> vector<8x64xf32>
    %120 = vector.broadcast %85 : vector<8x1xf32> to vector<8x64xf32>
    %121 = arith.addf %119, %120 : vector<8x64xf32>
    %cst_71 = arith.constant 0.000000e+00 : f32
    %122 = vector.broadcast %cst_71 : f32 to vector<8x64xf32>
    %123 = arith.maximumf %121, %122 : vector<8x64xf32>
    %c0_72 = arith.constant 0 : index
    %c0_73 = arith.constant 0 : index
    %124 = vector.load %arg11[%c0_72, %c0_73] : memref<4x8xf32, #tpu.memory_space<vmem>>, vector<4x8xf32>
    %cst_74 = arith.constant dense<0.000000e+00> : vector<4x64xf32>
    %125 = tpu.matmul %124, %123, %cst_74 {dimension_numbers = #tpu.dot_dimension_numbers<[1], [0], [0], [1], [0, 0, 1, 1], [], []>} : vector<4x8xf32>, vector<8x64xf32>, vector<4x64xf32> -> vector<4x64xf32>
    %c0_75 = arith.constant 0 : index
    %c0_76 = arith.constant 0 : index
    %126 = vector.load %arg12[%c0_75, %c0_76] : memref<4x1xf32, #tpu.memory_space<vmem>>, vector<4x1xf32>
    %127 = vector.broadcast %126 : vector<4x1xf32> to vector<4x64xf32>
    %128 = arith.addf %125, %127 : vector<4x64xf32>
    %c0_77 = arith.constant 0 : index
    %c0_78 = arith.constant 0 : index
    %c0_79 = arith.constant 0 : index
    %129 = vector.load %arg15[%c0_77, %c0_78, %c0_79] : memref<1x4x64xf32, #tpu.memory_space<vmem>>, vector<1x4x64xf32>
    %130 = vector.shape_cast %129 : vector<1x4x64xf32> to vector<4x64xf32>
    %131 = vector.shape_cast %128 : vector<4x64xf32> to vector<1x4x64xf32>
    tpu.vector_store %arg15[%c0_77, %c0_78, %c0_79], %131 {strides = array<i32>} : memref<1x4x64xf32, #tpu.memory_space<vmem>>, vector<1x4x64xf32>,
    %c0_80 = arith.constant 0 : index
    %c0_81 = arith.constant 0 : index
    %132 = vector.load %arg13[%c0_80, %c0_81] : memref<64x256xf32, #tpu.memory_space<vmem>>, vector<64x256xf32>
    %cst_82 = arith.constant dense<0.000000e+00> : vector<8x256xf32>
    %133 = tpu.matmul %123, %132, %cst_82 {dimension_numbers = #tpu.dot_dimension_numbers<[1], [0], [0], [1], [0, 0, 1, 1], [], []>} : vector<8x64xf32>, vector<64x256xf32>, vector<8x256xf32> -> vector<8x256xf32>
    %134 = arith.addf %133, %41 : vector<8x256xf32>
    %c0_83 = arith.constant 0 : index
    %c0_84 = arith.constant 0 : index
    %c0_85 = arith.constant 0 : index
    %135 = vector.load %arg14[%c0_83, %c0_84, %c0_85] : memref<1x8x256xf32, #tpu.memory_space<vmem>>, vector<1x8x256xf32>
    %136 = vector.shape_cast %135 : vector<1x8x256xf32> to vector<8x256xf32>
    %137 = vector.shape_cast %134 : vector<8x256xf32> to vector<1x8x256xf32>
    tpu.vector_store %arg14[%c0_83, %c0_84, %c0_85], %137 {strides = array<i32>} : memref<1x8x256xf32, #tpu.memory_space<vmem>>, vector<1x8x256xf32>,
    return
  }
  func.func @transform_0(%arg0: i32) -> (i32, i32, i32) {
    %c0_i32 = arith.constant 0 : i32
    %c0_i32_0 = arith.constant 0 : i32
    %c0_i32_1 = arith.constant 0 : i32
    return %arg0, %c0_i32, %c0_i32_0 : i32, i32, i32
  }
  func.func @transform_1(%arg0: i32) -> (i32, i32, i32) {
    %c0_i32 = arith.constant 0 : i32
    %c0_i32_0 = arith.constant 0 : i32
    %c0_i32_1 = arith.constant 0 : i32
    return %arg0, %c0_i32, %c0_i32_0 : i32, i32, i32
  }
  func.func @transform_2(%arg0: i32) -> (i32, i32) {
    %c0_i32 = arith.constant 0 : i32
    %c0_i32_0 = arith.constant 0 : i32
    %c0_i32_1 = arith.constant 0 : i32
    return %c0_i32, %c0_i32_0 : i32, i32
  }
  func.func @transform_3(%arg0: i32) -> (i32, i32) {
    %c0_i32 = arith.constant 0 : i32
    %c0_i32_0 = arith.constant 0 : i32
    %c0_i32_1 = arith.constant 0 : i32
    return %c0_i32, %c0_i32_0 : i32, i32
  }
  func.func @transform_4(%arg0: i32) -> (i32, i32) {
    %c0_i32 = arith.constant 0 : i32
    %c0_i32_0 = arith.constant 0 : i32
    %c0_i32_1 = arith.constant 0 : i32
    return %c0_i32, %c0_i32_0 : i32, i32
  }
  func.func @transform_5(%arg0: i32) -> (i32, i32) {
    %c0_i32 = arith.constant 0 : i32
    %c0_i32_0 = arith.constant 0 : i32
    %c0_i32_1 = arith.constant 0 : i32
    return %c0_i32, %c0_i32_0 : i32, i32
  }
  func.func @transform_6(%arg0: i32) -> (i32, i32) {
    %c0_i32 = arith.constant 0 : i32
    %c0_i32_0 = arith.constant 0 : i32
    %c0_i32_1 = arith.constant 0 : i32
    return %c0_i32, %c0_i32_0 : i32, i32
  }
  func.func @transform_7(%arg0: i32) -> (i32, i32) {
    %c0_i32 = arith.constant 0 : i32
    %c0_i32_0 = arith.constant 0 : i32
    %c0_i32_1 = arith.constant 0 : i32
    return %c0_i32, %c0_i32_0 : i32, i32
  }
  func.func @transform_8(%arg0: i32) -> (i32, i32) {
    %c0_i32 = arith.constant 0 : i32
    %c0_i32_0 = arith.constant 0 : i32
    %c0_i32_1 = arith.constant 0 : i32
    return %c0_i32, %c0_i32_0 : i32, i32
  }
  func.func @transform_9(%arg0: i32) -> (i32, i32) {
    %c0_i32 = arith.constant 0 : i32
    %c0_i32_0 = arith.constant 0 : i32
    %c0_i32_1 = arith.constant 0 : i32
    return %c0_i32, %c0_i32_0 : i32, i32
  }
  func.func @transform_10(%arg0: i32) -> (i32, i32) {
    %c0_i32 = arith.constant 0 : i32
    %c0_i32_0 = arith.constant 0 : i32
    %c0_i32_1 = arith.constant 0 : i32
    return %c0_i32, %c0_i32_0 : i32, i32
  }
  func.func @transform_11(%arg0: i32) -> (i32, i32) {
    %c0_i32 = arith.constant 0 : i32
    %c0_i32_0 = arith.constant 0 : i32
    %c0_i32_1 = arith.constant 0 : i32
    return %c0_i32, %c0_i32_0 : i32, i32
  }
  func.func @transform_12(%arg0: i32) -> (i32, i32) {
    %c0_i32 = arith.constant 0 : i32
    %c0_i32_0 = arith.constant 0 : i32
    %c0_i32_1 = arith.constant 0 : i32
    return %c0_i32, %c0_i32_0 : i32, i32
  }
  func.func @transform_13(%arg0: i32) -> (i32, i32, i32) {
    %c0_i32 = arith.constant 0 : i32
    %c0_i32_0 = arith.constant 0 : i32
    %c0_i32_1 = arith.constant 0 : i32
    return %arg0, %c0_i32, %c0_i32_0 : i32, i32, i32
  }
  func.func @transform_14(%arg0: i32) -> (i32, i32, i32) {
    %c0_i32 = arith.constant 0 : i32
    %c0_i32_0 = arith.constant 0 : i32
    %c0_i32_1 = arith.constant 0 : i32
    return %arg0, %c0_i32, %c0_i32_0 : i32, i32, i32
  }
}

</mosaic_0001>

<llo_original>
// kernel: sffm_forward.1
$region0: #{sffm_forward.1}
  #allocation0 [shape = 'u32[]', space=smem, size = 0x4, offset = 0x4, fixed_abs, tag = 'smem constant byte address 0x4 - core index']
  #allocation1 [shape = 'u32[144,128]{1,0:T(1,128)}', space=vmem, size = 0x12000, scoped, tag = 'internal scratch']
  %s0 = inlined_call_operand.vmem [shape: f32[2,8,256], index: 0, kind: input, shape index: {}]
  %s1 = inlined_call_operand.vmem [shape: f32[2,16,64], index: 1, kind: input, shape index: {}]
  %s2 = inlined_call_operand.vmem [shape: f32[9,256], index: 2, kind: input, shape index: {}]
  %s3 = inlined_call_operand.vmem [shape: f32[9,64], index: 3, kind: input, shape index: {}]
  %s4 = inlined_call_operand.vmem [shape: f32[8,72], index: 4, kind: input, shape index: {}]
  %s5 = inlined_call_operand.vmem [shape: f32[8,1], index: 5, kind: input, shape index: {}]
  %s6 = inlined_call_operand.vmem [shape: f32[8,144], index: 6, kind: input, shape index: {}]
  %s7 = inlined_call_operand.vmem [shape: f32[8,1], index: 7, kind: input, shape index: {}]
  %s8 = inlined_call_operand.vmem [shape: f32[8,72], index: 8, kind: input, shape index: {}]
  %s9 = inlined_call_operand.vmem [shape: f32[8,1], index: 9, kind: input, shape index: {}]
  %s10 = inlined_call_operand.vmem [shape: f32[4,8], index: 10, kind: input, shape index: {}]
  %s11 = inlined_call_operand.vmem [shape: f32[4,1], index: 11, kind: input, shape index: {}]
  %s12 = inlined_call_operand.vmem [shape: f32[64,256], index: 12, kind: input, shape index: {}]
  %s13 = inlined_call_operand.vmem [shape: f32[2,8,256], index: 13, kind: output, shape index: {0}]
  %s14 = inlined_call_operand.vmem [shape: f32[2,4,64], index: 14, kind: output, shape index: {1}]
  %15 = xla_tuple %s13, %s14
  %s16 = sld [smem:[#allocation0]]
  $region93: #{sffm_forward.1} parent=0
    _
  %s18 = ssub.s32 1, %s16
  %s19 = scalar_select 0, %s18, %s16
  loop: start=0, step=1, limit=4
  $region2: #{sffm_forward.1} parent=0 // loop_pre_header
    _
  $region3: #{sffm_forward.1} parent=0 // loop_header
    %s21 = sphi 0, %s25
    %p22 = scmp.ge.s32.totalorder %s21, 4
    %s31 = sphi 0, %s33
    %s34 = sphi 0, %s31
    %s35 = sphi 0, %s34
    %s51 = sphi 0, %s35
    %s57 = sphi 0, %s59
    %s60 = sphi 0, %s57
    %s61 = sphi 0, %s60
    %s77 = sphi 0, %s61
    %s81 = sphi 0, %s81
    %s83 = sphi 0, %s81
    %s84 = sphi 0, %s83
    %s98 = sphi 0, %s84
    %s102 = sphi 0, %s102
    %s104 = sphi 0, %s102
    %s105 = sphi 0, %s104
    %s119 = sphi 0, %s105
    %s123 = sphi 0, %s123
    %s125 = sphi 0, %s123
    %s126 = sphi 0, %s125
    %s140 = sphi 0, %s126
    %s144 = sphi 0, %s144
    %s146 = sphi 0, %s144
    %s147 = sphi 0, %s146
    %s161 = sphi 0, %s147
    %s165 = sphi 0, %s165
    %s167 = sphi 0, %s165
    %s168 = sphi 0, %s167
    %s182 = sphi 0, %s168
    %s186 = sphi 0, %s186
    %s188 = sphi 0, %s186
    %s189 = sphi 0, %s188
    %s203 = sphi 0, %s189
    %s207 = sphi 0, %s207
    %s209 = sphi 0, %s207
    %s210 = sphi 0, %s209
    %s224 = sphi 0, %s210
    %s228 = sphi 0, %s228
    %s230 = sphi 0, %s228
    %s231 = sphi 0, %s230
    %s245 = sphi 0, %s231
    %s249 = sphi 0, %s249
    %s251 = sphi 0, %s249
    %s252 = sphi 0, %s251
    %s266 = sphi 0, %s252
    %s270 = sphi 0, %s270
    %s272 = sphi 0, %s270
    %s273 = sphi 0, %s272
    %s287 = sphi 0, %s273
    %s291 = sphi 0, %s291
    %s293 = sphi 0, %s291
    %s294 = sphi 0, %s293
    %s308 = sphi 0, %s294
    %s314 = sphi 0, %s316
    %s317 = sphi 0, %s314
    %s318 = sphi 0, %s317
    %s334 = sphi 0, %s318
    %s340 = sphi 0, %s342
    %s343 = sphi 0, %s340
    %s344 = sphi 0, %s343
    %s360 = sphi 0, %s344
  $region4: #{sffm_forward.1} parent=0 // loop_header_branch
    %24 = sbr.rel (%p22) target = $region8
  $region5: #{sffm_forward.1} parent=0 // loop_body
    %s26 = ssub.s32 %s21, 1
    %s27 = ssub.s32 %s21, 2
    %s28 = sadd.s32 %s21, 1
    %s29 = ssub.s32 %s21, %s28
    %p30 = scmp.eq.s32.totalorder %s29, 0
    %s32 = sadd.s32 %s31, 1
    %s33 = scalar_select %p30, %s31, %s32
    %p36 = pneg %p30
    %p37 = scmp.eq.s32.totalorder %s21, 1
    %p38 = por %p36, %p37
    %p39 = scmp.ne.s32.totalorder %s31, %s34
    %p40 = scmp.eq.s32.totalorder %s21, 0
    %p41 = por %p39, %p40
    %p42 = scmp.ne.s32.totalorder %s31, %s34
    %p43 = scmp.eq.s32.totalorder %s26, 1
    %p44 = por %p42, %p43
    %p45 = scmp.ne.s32.totalorder %s34, %s35
    %p46 = scmp.eq.s32.totalorder %s26, 0
    %p47 = por %p45, %p46
    %p48 = scmp.ne.s32.totalorder %s34, %s35
    %p49 = scmp.eq.s32.totalorder %s27, 1
    %p50 = por %p48, %p49
    %p52 = scmp.ne.s32.totalorder %s35, %s51
    %p53 = scmp.eq.s32.totalorder %s27, 0
    %p54 = por %p52, %p53
    %s55 = ssub.s32 %s21, %s28
    %p56 = scmp.eq.s32.totalorder %s55, 0
    %s58 = sadd.s32 %s57, 1
    %s59 = scalar_select %p56, %s57, %s58
    %p62 = pneg %p56
    %p63 = scmp.eq.s32.totalorder %s21, 1
    %p64 = por %p62, %p63
    %p65 = scmp.ne.s32.totalorder %s57, %s60
    %p66 = scmp.eq.s32.totalorder %s21, 0
    %p67 = por %p65, %p66
    %p68 = scmp.ne.s32.totalorder %s57, %s60
    %p69 = scmp.eq.s32.totalorder %s26, 1
    %p70 = por %p68, %p69
    %p71 = scmp.ne.s32.totalorder %s60, %s61
    %p72 = scmp.eq.s32.totalorder %s26, 0
    %p73 = por %p71, %p72
    %p74 = scmp.ne.s32.totalorder %s60, %s61
    %p75 = scmp.eq.s32.totalorder %s27, 1
    %p76 = por %p74, %p75
    %p78 = scmp.ne.s32.totalorder %s61, %s77
    %p79 = scmp.eq.s32.totalorder %s27, 0
    %p80 = por %p78, %p79
    %s82 = sadd.s32 %s81, 1
    %p85 = scmp.eq.s32.totalorder %s21, 1
    %p86 = scmp.ne.s32.totalorder %s81, %s83
    %p87 = scmp.eq.s32.totalorder %s21, 0
    %p88 = por %p86, %p87
    %p89 = scmp.ne.s32.totalorder %s81, %s83
    %p90 = scmp.eq.s32.totalorder %s26, 1
    %p91 = por %p89, %p90
    %p92 = scmp.ne.s32.totalorder %s83, %s84
    %p93 = scmp.eq.s32.totalorder %s26, 0
    %p94 = por %p92, %p93
    %p95 = scmp.ne.s32.totalorder %s83, %s84
    %p96 = scmp.eq.s32.totalorder %s27, 1
    %p97 = por %p95, %p96
    %p99 = scmp.ne.s32.totalorder %s84, %s98
    %p100 = scmp.eq.s32.totalorder %s27, 0
    %p101 = por %p99, %p100
    %s103 = sadd.s32 %s102, 1
    %p106 = scmp.eq.s32.totalorder %s21, 1
    %p107 = scmp.ne.s32.totalorder %s102, %s104
    %p108 = scmp.eq.s32.totalorder %s21, 0
    %p109 = por %p107, %p108
    %p110 = scmp.ne.s32.totalorder %s102, %s104
    %p111 = scmp.eq.s32.totalorder %s26, 1
    %p112 = por %p110, %p111
    %p113 = scmp.ne.s32.totalorder %s104, %s105
    %p114 = scmp.eq.s32.totalorder %s26, 0
    %p115 = por %p113, %p114
    %p116 = scmp.ne.s32.totalorder %s104, %s105
    %p117 = scmp.eq.s32.totalorder %s27, 1
    %p118 = por %p116, %p117
    %p120 = scmp.ne.s32.totalorder %s105, %s119
    %p121 = scmp.eq.s32.totalorder %s27, 0
    %p122 = por %p120, %p121
    %s124 = sadd.s32 %s123, 1
    %p127 = scmp.eq.s32.totalorder %s21, 1
    %p128 = scmp.ne.s32.totalorder %s123, %s125
    %p129 = scmp.eq.s32.totalorder %s21, 0
    %p130 = por %p128, %p129
    %p131 = scmp.ne.s32.totalorder %s123, %s125
    %p132 = scmp.eq.s32.totalorder %s26, 1
    %p133 = por %p131, %p132
    %p134 = scmp.ne.s32.totalorder %s125, %s126
    %p135 = scmp.eq.s32.totalorder %s26, 0
    %p136 = por %p134, %p135
    %p137 = scmp.ne.s32.totalorder %s125, %s126
    %p138 = scmp.eq.s32.totalorder %s27, 1
    %p139 = por %p137, %p138
    %p141 = scmp.ne.s32.totalorder %s126, %s140
    %p142 = scmp.eq.s32.totalorder %s27, 0
    %p143 = por %p141, %p142
    %s145 = sadd.s32 %s144, 1
    %p148 = scmp.eq.s32.totalorder %s21, 1
    %p149 = scmp.ne.s32.totalorder %s144, %s146
    %p150 = scmp.eq.s32.totalorder %s21, 0
    %p151 = por %p149, %p150
    %p152 = scmp.ne.s32.totalorder %s144, %s146
    %p153 = scmp.eq.s32.totalorder %s26, 1
    %p154 = por %p152, %p153
    %p155 = scmp.ne.s32.totalorder %s146, %s147
    %p156 = scmp.eq.s32.totalorder %s26, 0
    %p157 = por %p155, %p156
    %p158 = scmp.ne.s32.totalorder %s146, %s147
    %p159 = scmp.eq.s32.totalorder %s27, 1
    %p160 = por %p158, %p159
    %p162 = scmp.ne.s32.totalorder %s147, %s161
    %p163 = scmp.eq.s32.totalorder %s27, 0
    %p164 = por %p162, %p163
    %s166 = sadd.s32 %s165, 1
    %p169 = scmp.eq.s32.totalorder %s21, 1
    %p170 = scmp.ne.s32.totalorder %s165, %s167
    %p171 = scmp.eq.s32.totalorder %s21, 0
    %p172 = por %p170, %p171
    %p173 = scmp.ne.s32.totalorder %s165, %s167
    %p174 = scmp.eq.s32.totalorder %s26, 1
    %p175 = por %p173, %p174
    %p176 = scmp.ne.s32.totalorder %s167, %s168
    %p177 = scmp.eq.s32.totalorder %s26, 0
    %p178 = por %p176, %p177
    %p179 = scmp.ne.s32.totalorder %s167, %s168
    %p180 = scmp.eq.s32.totalorder %s27, 1
    %p181 = por %p179, %p180
    %p183 = scmp.ne.s32.totalorder %s168, %s182
    %p184 = scmp.eq.s32.totalorder %s27, 0
    %p185 = por %p183, %p184
    %s187 = sadd.s32 %s186, 1
    %p190 = scmp.eq.s32.totalorder %s21, 1
    %p191 = scmp.ne.s32.totalorder %s186, %s188
    %p192 = scmp.eq.s32.totalorder %s21, 0
    %p193 = por %p191, %p192
    %p194 = scmp.ne.s32.totalorder %s186, %s188
    %p195 = scmp.eq.s32.totalorder %s26, 1
    %p196 = por %p194, %p195
    %p197 = scmp.ne.s32.totalorder %s188, %s189
    %p198 = scmp.eq.s32.totalorder %s26, 0
    %p199 = por %p197, %p198
    %p200 = scmp.ne.s32.totalorder %s188, %s189
    %p201 = scmp.eq.s32.totalorder %s27, 1
    %p202 = por %p200, %p201
    %p204 = scmp.ne.s32.totalorder %s189, %s203
    %p205 = scmp.eq.s32.totalorder %s27, 0
    %p206 = por %p204, %p205
    %s208 = sadd.s32 %s207, 1
    %p211 = scmp.eq.s32.totalorder %s21, 1
    %p212 = scmp.ne.s32.totalorder %s207, %s209
    %p213 = scmp.eq.s32.totalorder %s21, 0
    %p214 = por %p212, %p213
    %p215 = scmp.ne.s32.totalorder %s207, %s209
    %p216 = scmp.eq.s32.totalorder %s26, 1
    %p217 = por %p215, %p216
    %p218 = scmp.ne.s32.totalorder %s209, %s210
    %p219 = scmp.eq.s32.totalorder %s26, 0
    %p220 = por %p218, %p219
    %p221 = scmp.ne.s32.totalorder %s209, %s210
    %p222 = scmp.eq.s32.totalorder %s27, 1
    %p223 = por %p221, %p222
    %p225 = scmp.ne.s32.totalorder %s210, %s224
    %p226 = scmp.eq.s32.totalorder %s27, 0
    %p227 = por %p225, %p226
    %s229 = sadd.s32 %s228, 1
    %p232 = scmp.eq.s32.totalorder %s21, 1
    %p233 = scmp.ne.s32.totalorder %s228, %s230
    %p234 = scmp.eq.s32.totalorder %s21, 0
    %p235 = por %p233, %p234
    %p236 = scmp.ne.s32.totalorder %s228, %s230
    %p237 = scmp.eq.s32.totalorder %s26, 1
    %p238 = por %p236, %p237
    %p239 = scmp.ne.s32.totalorder %s230, %s231
    %p240 = scmp.eq.s32.totalorder %s26, 0
    %p241 = por %p239, %p240
    %p242 = scmp.ne.s32.totalorder %s230, %s231
    %p243 = scmp.eq.s32.totalorder %s27, 1
    %p244 = por %p242, %p243
    %p246 = scmp.ne.s32.totalorder %s231, %s245
    %p247 = scmp.eq.s32.totalorder %s27, 0
    %p248 = por %p246, %p247
    %s250 = sadd.s32 %s249, 1
    %p253 = scmp.eq.s32.totalorder %s21, 1
    %p254 = scmp.ne.s32.totalorder %s249, %s251
    %p255 = scmp.eq.s32.totalorder %s21, 0
    %p256 = por %p254, %p255
    %p257 = scmp.ne.s32.totalorder %s249, %s251
    %p258 = scmp.eq.s32.totalorder %s26, 1
    %p259 = por %p257, %p258
    %p260 = scmp.ne.s32.totalorder %s251, %s252
    %p261 = scmp.eq.s32.totalorder %s26, 0
    %p262 = por %p260, %p261
    %p263 = scmp.ne.s32.totalorder %s251, %s252
    %p264 = scmp.eq.s32.totalorder %s27, 1
    %p265 = por %p263, %p264
    %p267 = scmp.ne.s32.totalorder %s252, %s266
    %p268 = scmp.eq.s32.totalorder %s27, 0
    %p269 = por %p267, %p268
    %s271 = sadd.s32 %s270, 1
    %p274 = scmp.eq.s32.totalorder %s21, 1
    %p275 = scmp.ne.s32.totalorder %s270, %s272
    %p276 = scmp.eq.s32.totalorder %s21, 0
    %p277 = por %p275, %p276
    %p278 = scmp.ne.s32.totalorder %s270, %s272
    %p279 = scmp.eq.s32.totalorder %s26, 1
    %p280 = por %p278, %p279
    %p281 = scmp.ne.s32.totalorder %s272, %s273
    %p282 = scmp.eq.s32.totalorder %s26, 0
    %p283 = por %p281, %p282
    %p284 = scmp.ne.s32.totalorder %s272, %s273
    %p285 = scmp.eq.s32.totalorder %s27, 1
    %p286 = por %p284, %p285
    %p288 = scmp.ne.s32.totalorder %s273, %s287
    %p289 = scmp.eq.s32.totalorder %s27, 0
    %p290 = por %p288, %p289
    %s292 = sadd.s32 %s291, 1
    %p295 = scmp.eq.s32.totalorder %s21, 1
    %p296 = scmp.ne.s32.totalorder %s291, %s293
    %p297 = scmp.eq.s32.totalorder %s21, 0
    %p298 = por %p296, %p297
    %p299 = scmp.ne.s32.totalorder %s291, %s293
    %p300 = scmp.eq.s32.totalorder %s26, 1
    %p301 = por %p299, %p300
    %p302 = scmp.ne.s32.totalorder %s293, %s294
    %p303 = scmp.eq.s32.totalorder %s26, 0
    %p304 = por %p302, %p303
    %p305 = scmp.ne.s32.totalorder %s293, %s294
    %p306 = scmp.eq.s32.totalorder %s27, 1
    %p307 = por %p305, %p306
    %p309 = scmp.ne.s32.totalorder %s294, %s308
    %p310 = scmp.eq.s32.totalorder %s27, 0
    %p311 = por %p309, %p310
    %s312 = ssub.s32 %s21, %s28
    %p313 = scmp.eq.s32.totalorder %s312, 0
    %s315 = sadd.s32 %s314, 1
    %s316 = scalar_select %p313, %s314, %s315
    %p319 = pneg %p313
    %p320 = scmp.eq.s32.totalorder %s21, 1
    %p321 = por %p319, %p320
    %p322 = scmp.ne.s32.totalorder %s314, %s317
    %p323 = scmp.eq.s32.totalorder %s21, 0
    %p324 = por %p322, %p323
    %p325 = scmp.ne.s32.totalorder %s314, %s317
    %p326 = scmp.eq.s32.totalorder %s26, 1
    %p327 = por %p325, %p326
    %p328 = scmp.ne.s32.totalorder %s317, %s318
    %p329 = scmp.eq.s32.totalorder %s26, 0
    %p330 = por %p328, %p329
    %p331 = scmp.ne.s32.totalorder %s317, %s318
    %p332 = scmp.eq.s32.totalorder %s27, 1
    %p333 = por %p331, %p332
    %p335 = scmp.ne.s32.totalorder %s318, %s334
    %p336 = scmp.eq.s32.totalorder %s27, 0
    %p337 = por %p335, %p336
    %s338 = ssub.s32 %s21, %s28
    %p339 = scmp.eq.s32.totalorder %s338, 0
    %s341 = sadd.s32 %s340, 1
    %s342 = scalar_select %p339, %s340, %s341
    %p345 = pneg %p339
    %p346 = scmp.eq.s32.totalorder %s21, 1
    %p347 = por %p345, %p346
    %p348 = scmp.ne.s32.totalorder %s340, %s343
    %p349 = scmp.eq.s32.totalorder %s21, 0
    %p350 = por %p348, %p349
    %p351 = scmp.ne.s32.totalorder %s340, %s343
    %p352 = scmp.eq.s32.totalorder %s26, 1
    %p353 = por %p351, %p352
    %p354 = scmp.ne.s32.totalorder %s343, %s344
    %p355 = scmp.eq.s32.totalorder %s26, 0
    %p356 = por %p354, %p355
    %p357 = scmp.ne.s32.totalorder %s343, %s344
    %p358 = scmp.eq.s32.totalorder %s27, 1
    %p359 = por %p357, %p358
    %p361 = scmp.ne.s32.totalorder %s344, %s360
    %p362 = scmp.eq.s32.totalorder %s27, 0
    %p363 = por %p361, %p362
    %p364 = scmp.le.s32.totalorder 1, %s21
    %p365 = scmp.lt.s32.totalorder %s21, 3
    %p366 = pnand %p364, %p365
    %p367 = pneg %p366
    // Predicated region
    $region9: #{sffm_forward.1} parent=5 // pred_check
      _
    $region10: #{sffm_forward.1} parent=5 // pred_check_branch
      %369 = sbr.rel (%p366) target = $region12
    $region11: #{sffm_forward.1} parent=5 // pred_region
      %s370 = ssub.s32 %s21, 1
      // Predicated region
      $region13: #{sffm_forward.1} parent=11 // pred_check
        %p371 = pneg %p94
      $region14: #{sffm_forward.1} parent=11 // pred_check_branch
        %373 = sbr.rel (%p371) target = $region16
      $region15: #{sffm_forward.1} parent=11 // pred_region
        _
      $region16: #{sffm_forward.1} parent=11 // pred_fallthru
        _
      // Predicated region
      $region17: #{sffm_forward.1} parent=11 // pred_check
        %p374 = pneg %p115
      $region18: #{sffm_forward.1} parent=11 // pred_check_branch
        %376 = sbr.rel (%p374) target = $region20
      $region19: #{sffm_forward.1} parent=11 // pred_region
        _
      $region20: #{sffm_forward.1} parent=11 // pred_fallthru
        _
      // Predicated region
      $region21: #{sffm_forward.1} parent=11 // pred_check
        %p377 = pneg %p136
      $region22: #{sffm_forward.1} parent=11 // pred_check_branch
        %379 = sbr.rel (%p377) target = $region24
      $region23: #{sffm_forward.1} parent=11 // pred_region
        _
      $region24: #{sffm_forward.1} parent=11 // pred_fallthru
        _
      // Predicated region
      $region25: #{sffm_forward.1} parent=11 // pred_check
        %p380 = pneg %p157
      $region26: #{sffm_forward.1} parent=11 // pred_check_branch
        %382 = sbr.rel (%p380) target = $region28
      $region27: #{sffm_forward.1} parent=11 // pred_region
        _
      $region28: #{sffm_forward.1} parent=11 // pred_fallthru
        _
      // Predicated region
      $region29: #{sffm_forward.1} parent=11 // pred_check
        %p383 = pneg %p178
      $region30: #{sffm_forward.1} parent=11 // pred_check_branch
        %385 = sbr.rel (%p383) target = $region32
      $region31: #{sffm_forward.1} parent=11 // pred_region
        _
      $region32: #{sffm_forward.1} parent=11 // pred_fallthru
        _
      // Predicated region
      $region33: #{sffm_forward.1} parent=11 // pred_check
        %p386 = pneg %p199
      $region34: #{sffm_forward.1} parent=11 // pred_check_branch
        %388 = sbr.rel (%p386) target = $region36
      $region35: #{sffm_forward.1} parent=11 // pred_region
        _
      $region36: #{sffm_forward.1} parent=11 // pred_fallthru
        _
      // Predicated region
      $region37: #{sffm_forward.1} parent=11 // pred_check
        %p389 = pneg %p220
      $region38: #{sffm_forward.1} parent=11 // pred_check_branch
        %391 = sbr.rel (%p389) target = $region40
      $region39: #{sffm_forward.1} parent=11 // pred_region
        _
      $region40: #{sffm_forward.1} parent=11 // pred_fallthru
        _
      // Predicated region
      $region41: #{sffm_forward.1} parent=11 // pred_check
        %p392 = pneg %p241
      $region42: #{sffm_forward.1} parent=11 // pred_check_branch
        %394 = sbr.rel (%p392) target = $region44
      $region43: #{sffm_forward.1} parent=11 // pred_region
        _
      $region44: #{sffm_forward.1} parent=11 // pred_fallthru
        _
      // Predicated region
      $region45: #{sffm_forward.1} parent=11 // pred_check
        %p395 = pneg %p262
      $region46: #{sffm_forward.1} parent=11 // pred_check_branch
        %397 = sbr.rel (%p395) target = $region48
      $region47: #{sffm_forward.1} parent=11 // pred_region
        _
      $region48: #{sffm_forward.1} parent=11 // pred_fallthru
        _
      // Predicated region
      $region49: #{sffm_forward.1} parent=11 // pred_check
        %p398 = pneg %p283
      $region50: #{sffm_forward.1} parent=11 // pred_check_branch
        %400 = sbr.rel (%p398) target = $region52
      $region51: #{sffm_forward.1} parent=11 // pred_region
        _
      $region52: #{sffm_forward.1} parent=11 // pred_fallthru
        _
      // Predicated region
      $region53: #{sffm_forward.1} parent=11 // pred_check
        %p401 = pneg %p304
      $region54: #{sffm_forward.1} parent=11 // pred_check_branch
        %403 = sbr.rel (%p401) target = $region56
      $region55: #{sffm_forward.1} parent=11 // pred_region
        _
      $region56: #{sffm_forward.1} parent=11 // pred_fallthru
        _
    $region12: #{sffm_forward.1} parent=5 // pred_fallthru
      _
    %p404 = scmp.lt.s32.totalorder %s21, 2
    // Predicated region
    $region57: #{sffm_forward.1} parent=5 // pred_check
      %p405 = pneg %p404
    $region58: #{sffm_forward.1} parent=5 // pred_check_branch
      %407 = sbr.rel (%p405) target = $region60
    $region59: #{sffm_forward.1} parent=5 // pred_region
      // Predicated region
      $region61: #{sffm_forward.1} parent=59 // pred_check
        %p408 = pneg %p41
      $region62: #{sffm_forward.1} parent=59 // pred_check_branch
        %410 = sbr.rel (%p408) target = $region64
      $region63: #{sffm_forward.1} parent=59 // pred_region
        %p411 = scmp.lt.s32.totalorder %s21, 1
        %s412 = scalar_select %p411, %s21, 1
        %s413 = smul.addr %s412, 2
        %s414 = smul.addr %s413, 8
        %s415 = scalar_lea.vmem %s0, %s414
      $region64: #{sffm_forward.1} parent=59 // pred_fallthru
        _
      // Predicated region
      $region65: #{sffm_forward.1} parent=59 // pred_check
        %p416 = pneg %p67
      $region66: #{sffm_forward.1} parent=59 // pred_check_branch
        %418 = sbr.rel (%p416) target = $region68
      $region67: #{sffm_forward.1} parent=59 // pred_region
        %p419 = scmp.lt.s32.totalorder %s21, 1
        %s420 = scalar_select %p419, %s21, 1
        %s421 = smul.addr %s420, 2
        %s422 = smul.addr %s421, 8
        %s423 = scalar_lea.vmem %s1, %s422
      $region68: #{sffm_forward.1} parent=59 // pred_fallthru
        _
    $region60: #{sffm_forward.1} parent=5 // pred_fallthru
      _
    %p424 = scmp.le.s32.totalorder 1, %s21
    %p425 = scmp.lt.s32.totalorder %s21, 3
    %p426 = pnand %p424, %p425
    %p427 = pneg %p426
    // Predicated region
    $region69: #{sffm_forward.1} parent=5 // pred_check
      _
    $region70: #{sffm_forward.1} parent=5 // pred_check_branch
      %429 = sbr.rel (%p426) target = $region72
    $region71: #{sffm_forward.1} parent=5 // pred_region
      %s430 = ssub.s32 %s21, 1
      %p431 = scmp.lt.s32.totalorder %s26, 1
      %s432 = scalar_select %p431, %s26, 1
      %s433 = smul.addr %s432, 2
      %s434 = smul.addr %s433, 8
      %s435 = scalar_lea.vmem %s0, %s434
      %p436 = pneg %p47
      %p437 = pneg %p44
      %p438 = scmp.lt.s32.totalorder %s26, 1
      %s439 = scalar_select %p438, %s26, 1
      %s440 = smul.addr %s439, 2
      %s441 = smul.addr %s440, 8
      %s442 = scalar_lea.vmem %s1, %s441
      %p443 = pneg %p73
      %p444 = pneg %p70
      %p445 = pneg %p94
      %p446 = pneg %p91
      %p447 = pneg %p115
      %p448 = pneg %p112
      %p449 = pneg %p136
      %p450 = pneg %p133
      %p451 = pneg %p157
      %p452 = pneg %p154
      %p453 = pneg %p178
      %p454 = pneg %p175
      %p455 = pneg %p199
      %p456 = pneg %p196
      %p457 = pneg %p220
      %p458 = pneg %p217
      %p459 = pneg %p241
      %p460 = pneg %p238
      %p461 = pneg %p262
      %p462 = pneg %p259
      %p463 = pneg %p283
      %p464 = pneg %p280
      %p465 = pneg %p304
      %p466 = pneg %p301
      %p467 = pneg %p330
      %p468 = pneg %p327
      %p469 = scmp.lt.s32.totalorder %s26, 1
      %s470 = scalar_select %p469, %s26, 1
      %s471 = smul.addr %s470, 2
      %s472 = smul.addr %s471, 8
      %s473 = scalar_lea.vmem %s13, %s472
      %p474 = pneg %p356
      %p475 = pneg %p353
      %p476 = scmp.lt.s32.totalorder %s26, 1
      %s477 = scalar_select %p476, %s26, 1
      %s478 = smul.addr %s477, 4
      %s479 = scalar_lea.vmem %s14, %s478
      %p480 = scmp.lt.s32.totalorder %s26, 1
      %s481 = scalar_select %p480, %s26, 1
      %s482 = smul.addr %s481, 2
      %s483 = smul.addr %s482, 8
      %s484 = scalar_lea.vmem %s0, %s483
      %p485 = scmp.lt.s32.totalorder %s26, 1
      %s486 = scalar_select %p485, %s26, 1
      %s487 = smul.addr %s486, 2
      %s488 = smul.addr %s487, 8
      %s489 = scalar_lea.vmem %s1, %s488
      %p490 = scmp.lt.s32.totalorder %s26, 1
      %s491 = scalar_select %p490, %s26, 1
      %s492 = smul.addr %s491, 2
      %s493 = smul.addr %s492, 8
      %s494 = scalar_lea.vmem %s13, %s493
      %p495 = scmp.lt.s32.totalorder %s26, 1
      %s496 = scalar_select %p495, %s26, 1
      %s497 = smul.addr %s496, 4
      %s498 = scalar_lea.vmem %s14, %s497
      %v499 = vld [vmem:[%s484] sm:$0xff]
      %v500 = vld [vmem:[%s484 + $0x8] sm:$0xff]
      %v501 = vld [vmem:[%s4] sm:$0xff]
      %v502 = vld [vmem:[%s5] sm:$0xff]
      %503 = vrot.lane.b32.xlu0 %v499, 17
      %v504 = vpop.permute.xlu0 %503
      %505 = vrot.lane.b32.xlu0 %v500, 17
      %v506 = vpop.permute.xlu0 %505
      %v507 = vlaneseq
      %v508 = vand.u32 %v507, 127
      %vm509 = vcmp.lt.s32.totalorder %v508, 17
      %v510 = vsel %vm509, %v504, %v506
      %v511 = vsel %vm509, %v506, %v504
      %v512 = vld [vmem:[%s2] ss:$8 sm:$0x3]
      %v514 = vlaneseq
      %v515 = vshrl.u32 %v514, 7
      %v516 = vsub.s32 0, %v515
      %v517 = vrot.slane %v512, %v516
      %v518 = vlaneseq
      %v519 = vshrl.u32 %v518, 7
      %v520 = vsub.s32 1, %v519
      %v521 = vrot.slane %v512, %v520
      %v524 = vmul.f32 %v511, %v517
      %v525 = vmul.f32 %v510, %v521
      %526 = vrot.lane.b32.xlu0 %v499, 16
      %v527 = vpop.permute.xlu0 %526
      %528 = vrot.lane.b32.xlu0 %v500, 16
      %v529 = vpop.permute.xlu0 %528
      %vm530 = vcmp.lt.s32.totalorder %v508, 16
      %v531 = vsel %vm530, %v527, %v529
      %v532 = vsel %vm530, %v529, %v527
      %s533 = scalar_lea.vmem %s2, 1
      %v534 = vld [vmem:[%s533] ss:$8 sm:$0x3]
      %v536 = vlaneseq
      %v537 = vshrl.u32 %v536, 7
      %v538 = vsub.s32 0, %v537
      %v539 = vrot.slane %v534, %v538
      %v540 = vlaneseq
      %v541 = vshrl.u32 %v540, 7
      %v542 = vsub.s32 1, %v541
      %v543 = vrot.slane %v534, %v542
      %v546 = vmul.f32 %v532, %v539
      %v547 = vmul.f32 %v531, %v543
      %548 = vrot.lane.b32.xlu0 %v499, 15
      %v549 = vpop.permute.xlu0 %548
      %550 = vrot.lane.b32.xlu0 %v500, 15
      %v551 = vpop.permute.xlu0 %550
      %vm552 = vcmp.lt.s32.totalorder %v508, 15
      %v553 = vsel %vm552, %v549, %v551
      %v554 = vsel %vm552, %v551, %v549
      %s555 = scalar_lea.vmem %s2, 2
      %v556 = vld [vmem:[%s555] ss:$8 sm:$0x3]
      %v558 = vlaneseq
      %v559 = vshrl.u32 %v558, 7
      %v560 = vsub.s32 0, %v559
      %v561 = vrot.slane %v556, %v560
      %v562 = vlaneseq
      %v563 = vshrl.u32 %v562, 7
      %v564 = vsub.s32 1, %v563
      %v565 = vrot.slane %v556, %v564
      %v568 = vmul.f32 %v554, %v561
      %v569 = vmul.f32 %v553, %v565
      %570 = vrot.lane.b32.xlu0 %v499, 1
      %v571 = vpop.permute.xlu0 %570
      %572 = vrot.lane.b32.xlu0 %v500, 1
      %v573 = vpop.permute.xlu0 %572
      %vm574 = vcmp.lt.s32.totalorder %v508, 1
      %v575 = vsel %vm574, %v571, %v573
      %v576 = vsel %vm574, %v573, %v571
      %s577 = scalar_lea.vmem %s2, 3
      %v578 = vld [vmem:[%s577] ss:$8 sm:$0x3]
      %v580 = vlaneseq
      %v581 = vshrl.u32 %v580, 7
      %v582 = vsub.s32 0, %v581
      %v583 = vrot.slane %v578, %v582
      %v584 = vlaneseq
      %v585 = vshrl.u32 %v584, 7
      %v586 = vsub.s32 1, %v585
      %v587 = vrot.slane %v578, %v586
      %v590 = vmul.f32 %v576, %v583
      %v591 = vmul.f32 %v575, %v587
      %592 = vrot.lane.b32.xlu0 %v499, 127
      %v593 = vpop.permute.xlu0 %592
      %594 = vrot.lane.b32.xlu0 %v500, 127
      %v595 = vpop.permute.xlu0 %594
      %vm596 = vcmp.lt.s32.totalorder %v508, 127
      %v597 = vsel %vm596, %v593, %v595
      %v598 = vsel %vm596, %v595, %v593
      %s599 = scalar_lea.vmem %s2, 5
      %v600 = vld [vmem:[%s599] ss:$8 sm:$0x3]
      %v602 = vlaneseq
      %v603 = vshrl.u32 %v602, 7
      %v604 = vsub.s32 0, %v603
      %v605 = vrot.slane %v600, %v604
      %v606 = vlaneseq
      %v607 = vshrl.u32 %v606, 7
      %v608 = vsub.s32 1, %v607
      %v609 = vrot.slane %v600, %v608
      %v612 = vmul.f32 %v597, %v605
      %v613 = vmul.f32 %v598, %v609
      %614 = vrot.lane.b32.xlu0 %v499, 113
      %v615 = vpop.permute.xlu0 %614
      %616 = vrot.lane.b32.xlu0 %v500, 113
      %v617 = vpop.permute.xlu0 %616
      %vm618 = vcmp.lt.s32.totalorder %v508, 113
      %v619 = vsel %vm618, %v615, %v617
      %v620 = vsel %vm618, %v617, %v615
      %s621 = scalar_lea.vmem %s2, 6
      %v622 = vld [vmem:[%s621] ss:$8 sm:$0x3]
      %v624 = vlaneseq
      %v625 = vshrl.u32 %v624, 7
      %v626 = vsub.s32 0, %v625
      %v627 = vrot.slane %v622, %v626
      %v628 = vlaneseq
      %v629 = vshrl.u32 %v628, 7
      %v630 = vsub.s32 1, %v629
      %v631 = vrot.slane %v622, %v630
      %v634 = vmul.f32 %v619, %v627
      %v635 = vmul.f32 %v620, %v631
      %636 = vrot.lane.b32.xlu0 %v499, 112
      %v637 = vpop.permute.xlu0 %636
      %638 = vrot.lane.b32.xlu0 %v500, 112
      %v639 = vpop.permute.xlu0 %638
      %vm640 = vcmp.lt.s32.totalorder %v508, 112
      %v641 = vsel %vm640, %v637, %v639
      %v642 = vsel %vm640, %v639, %v637
      %s643 = scalar_lea.vmem %s2, 7
      %v644 = vld [vmem:[%s643] ss:$8 sm:$0x3]
      %v646 = vlaneseq
      %v647 = vshrl.u32 %v646, 7
      %v648 = vsub.s32 0, %v647
      %v649 = vrot.slane %v644, %v648
      %v650 = vlaneseq
      %v651 = vshrl.u32 %v650, 7
      %v652 = vsub.s32 1, %v651
      %v653 = vrot.slane %v644, %v652
      %v656 = vmul.f32 %v641, %v649
      %v657 = vmul.f32 %v642, %v653
      %658 = vrot.lane.b32.xlu0 %v499, 111
      %v659 = vpop.permute.xlu0 %658
      %660 = vrot.lane.b32.xlu0 %v500, 111
      %v661 = vpop.permute.xlu0 %660
      %vm662 = vcmp.lt.s32.totalorder %v508, 111
      %v663 = vsel %vm662, %v659, %v661
      %v664 = vsel %vm662, %v661, %v659
      %s665 = scalar_lea.vmem %s2, 16
      %v666 = vld [vmem:[%s665] ss:$8 sm:$0x3]
      %v668 = vlaneseq
      %v669 = vshrl.u32 %v668, 7
      %v670 = vsub.s32 0, %v669
      %v671 = vrot.slane %v666, %v670
      %v672 = vlaneseq
      %v673 = vshrl.u32 %v672, 7
      %v674 = vsub.s32 1, %v673
      %v675 = vrot.slane %v666, %v674
      %v678 = vmul.f32 %v663, %v671
      %v679 = vmul.f32 %v664, %v675
      %681 = vset.pattern.permute.xlu0 0
      %682 = vperm.xlu0 %681, %v502
      %v683 = vpop.permute.xlu0 %682
      %vm685 = vcmask 588800
      %v687 = vsel %vm685, %v501, 0
      %689 = vmatprep.subr.mxu0 0.0
      %690 = vmatpush1.msra.mxu0 0.0
      %691 = vmatprep.subr.mxu0 0.0
      %692 = vmatpush1.msra.mxu0 0.0
      %693 = vmatprep.subr.mxu0 0.0
      %694 = vmatpush1.msra.mxu0 0.0
      %695 = vmatprep.subr.mxu0 0.0
      %696 = vmatpush1.msra.mxu0 0.0
      %697 = vmatprep.subr.mxu0 0.0
      %698 = vmatpush1.msra.mxu0 0.0
      %699 = vmatprep.subr.mxu0 0.0
      %700 = vmatpush1.msra.mxu0 0.0
      %701 = vmatprep.subr.mxu0 0.0
      %702 = vmatpush1.msra.mxu0 0.0
      %703 = vmatprep.subr.mxu0 %v679
      %704 = vmatpush1.msra.mxu0 %v678
      %705 = vmatprep.subr.mxu0 %v657
      %706 = vmatpush1.msra.mxu0 %v656
      %707 = vmatprep.subr.mxu0 %v635
      %708 = vmatpush1.msra.mxu0 %v634
      %709 = vmatprep.subr.mxu0 %v613
      %710 = vmatpush1.msra.mxu0 %v612
      %711 = vmatprep.subr.mxu0 %v500
      %712 = vmatpush1.msra.mxu0 %v499
      %713 = vmatprep.subr.mxu0 %v591
      %714 = vmatpush1.msra.mxu0 %v590
      %715 = vmatprep.subr.mxu0 %v569
      %716 = vmatpush1.msra.mxu0 %v568
      %717 = vmatprep.subr.mxu0 %v547
      %718 = vmatpush1.msra.mxu0 %v546
      %719 = vmatprep.subr.mxu0 %v525
      %720 = vmatpush1.msra.mxu0 %v524
      %721 = vmatprep.subr.mxu0 0.0
      %722 = vmatpush2.msra.mxu0 0.0
      %723 = vmatprep.subr.mxu0 0.0
      %724 = vmatpush2.msra.mxu0 0.0
      %725 = vmatprep.subr.mxu0 0.0
      %726 = vmatpush2.msra.mxu0 0.0
      %727 = vmatprep.subr.mxu0 0.0
      %728 = vmatpush2.msra.mxu0 0.0
      %729 = vmatprep.subr.mxu0 0.0
      %730 = vmatpush2.msra.mxu0 0.0
      %731 = vmatprep.subr.mxu0 0.0
      %732 = vmatpush2.msra.mxu0 0.0
      %733 = vmatprep.subr.mxu0 0.0
      %734 = vmatpush2.msra.mxu0 0.0
      %735 = vmatprep.subr.mxu0 0.0
      %736 = vmatpush2.msra.mxu0 0.0
      %737 = vmatprep.subr.mxu0 0.0
      %738 = vmatpush2.msra.mxu0 0.0
      %739 = vmatprep.subr.mxu0 0.0
      %740 = vmatpush2.msra.mxu0 0.0
      %741 = vmatprep.subr.mxu0 0.0
      %742 = vmatpush2.msra.mxu0 0.0
      %743 = vmatprep.subr.mxu0 0.0
      %744 = vmatpush2.msra.mxu0 0.0
      %745 = vmatprep.subr.mxu0 0.0
      %746 = vmatpush2.msra.mxu0 0.0
      %747 = vmatprep.subr.mxu0 0.0
      %748 = vmatpush2.msra.mxu0 0.0
      %749 = vmatprep.subr.mxu0 0.0
      %750 = vmatpush2.msra.mxu0 0.0
      %751 = vmatprep.subr.mxu0 0.0
      %752 = vmatpush2.msra.mxu0 0.0
      %753 = vmatprep.mubr.f32.mxu0 0.0
      %754 = vmatmul.mubr.f32.gmra.mxu0 %v687
      %v755 = vpop.f32.mrf.mxu0
      %v756 = vadd.f32 %v683, %v755
      %v757 = vpop.f32.mrf.mxu0
      %v758 = vadd.f32 %v683, %v757
      %759 = vdwg.mxu0
      %v760 = vmax.f32 %v756, 0.0
      %v761 = vmax.f32 %v758, 0.0
      %v762 = vld [vmem:[%s489] sm:$0xff]
      %v763 = vld [vmem:[%s489 + $0x8] sm:$0xff]
      %v764 = vld [vmem:[%s6] sm:$0xff]
      %v765 = vld [vmem:[%s6 + $0x8] sm:$0xff]
      %v766 = vld [vmem:[%s7] sm:$0xff]
      %vm767 = vcmask 1048064
      %768 = vrot.lane.b32.xlu0 %v762, 64
      %v769 = vpop.permute.xlu0 %768
      %v770 = vsel %vm767, %v769, %v762
      %771 = vrot.lane.b32.xlu0 %v763, 64
      %v772 = vpop.permute.xlu0 %771
      %v773 = vsel %vm767, %v772, %v763
      %774 = vrot.lane.b32.xlu0 %v770, 64
      %v775 = vpop.permute.xlu0 %774
      %776 = vrot.lane.b32.xlu0 %v773, 64
      %v777 = vpop.permute.xlu0 %776
      %v778 = vsel %vm767, %v775, %v762
      %v779 = vsel %vm767, %v777, %v763
      %v780 = vld [vmem:[%s3] sm:$0x1]
      %v781 = vlaneseq
      %v782 = vshrl.u32 %v781, 7
      %v783 = vsub.s32 0, %v782
      %v784 = vrot.slane %v780, %v783
      %786 = vrot.lane.b32.xlu0 %v784, 55
      %v787 = vpop.permute.xlu0 %786
      %v789 = vmul.f32 %v778, %v787
      %v790 = vmul.f32 %v779, %v787
      %v791 = vld [vmem:[%s3 + $0x1] sm:$0x1]
      %v792 = vlaneseq
      %v793 = vshrl.u32 %v792, 7
      %v794 = vsub.s32 0, %v793
      %v795 = vrot.slane %v791, %v794
      %797 = vrot.lane.b32.xlu0 %v795, 56
      %v798 = vpop.permute.xlu0 %797
      %v800 = vmul.f32 %v778, %v798
      %v801 = vmul.f32 %v779, %v798
      %v802 = vld [vmem:[%s3 + $0x2] sm:$0x1]
      %v803 = vlaneseq
      %v804 = vshrl.u32 %v803, 7
      %v805 = vsub.s32 0, %v804
      %v806 = vrot.slane %v802, %v805
      %808 = vrot.lane.b32.xlu0 %v806, 57
      %v809 = vpop.permute.xlu0 %808
      %v811 = vmul.f32 %v778, %v809
      %v812 = vmul.f32 %v779, %v809
      %v813 = vld [vmem:[%s3 + $0x3] sm:$0x1]
      %v814 = vlaneseq
      %v815 = vshrl.u32 %v814, 7
      %v816 = vsub.s32 0, %v815
      %v817 = vrot.slane %v813, %v816
      %819 = vrot.lane.b32.xlu0 %v817, 63
      %v820 = vpop.permute.xlu0 %819
      %v822 = vmul.f32 %v778, %v820
      %v823 = vmul.f32 %v779, %v820
      %v824 = vld [vmem:[%s3 + $0x5] sm:$0x1]
      %v825 = vlaneseq
      %v826 = vshrl.u32 %v825, 7
      %v827 = vsub.s32 0, %v826
      %v828 = vrot.slane %v824, %v827
      %830 = vrot.lane.b32.xlu0 %v828, 1
      %v831 = vpop.permute.xlu0 %830
      %v833 = vmul.f32 %v778, %v831
      %v834 = vmul.f32 %v779, %v831
      %v835 = vld [vmem:[%s3 + $0x6] sm:$0x1]
      %v836 = vlaneseq
      %v837 = vshrl.u32 %v836, 7
      %v838 = vsub.s32 0, %v837
      %v839 = vrot.slane %v835, %v838
      %841 = vrot.lane.b32.xlu0 %v839, 7
      %v842 = vpop.permute.xlu0 %841
      %v844 = vmul.f32 %v778, %v842
      %v845 = vmul.f32 %v779, %v842
      %v846 = vld [vmem:[%s3 + $0x7] sm:$0x1]
      %v847 = vlaneseq
      %v848 = vshrl.u32 %v847, 7
      %v849 = vsub.s32 0, %v848
      %v850 = vrot.slane %v846, %v849
      %852 = vrot.lane.b32.xlu0 %v850, 8
      %v853 = vpop.permute.xlu0 %852
      %v855 = vmul.f32 %v778, %v853
      %v856 = vmul.f32 %v779, %v853
      %v857 = vld [vmem:[%s3 + $0x8] sm:$0x1]
      %v858 = vlaneseq
      %v859 = vshrl.u32 %v858, 7
      %v860 = vsub.s32 0, %v859
      %v861 = vrot.slane %v857, %v860
      %863 = vrot.lane.b32.xlu0 %v861, 9
      %v864 = vpop.permute.xlu0 %863
      %v866 = vmul.f32 %v778, %v864
      %v867 = vmul.f32 %v779, %v864
      %870 = vrot.lane.b32.xlu0 %v800, 127
      %v871 = vpop.permute.xlu0 %870
      %872 = vrot.lane.b32.xlu0 %v801, 127
      %v873 = vpop.permute.xlu0 %872
      %876 = vrot.lane.b32.xlu0 %v811, 126
      %v877 = vpop.permute.xlu0 %876
      %878 = vrot.lane.b32.xlu0 %v812, 126
      %v879 = vpop.permute.xlu0 %878
      %882 = vrot.lane.b32.xlu0 %v822, 120
      %v883 = vpop.permute.xlu0 %882
      %884 = vrot.lane.b32.xlu0 %v823, 120
      %v885 = vpop.permute.xlu0 %884
      %888 = vrot.lane.b32.xlu0 %v762, 55
      %v889 = vpop.permute.xlu0 %888
      %890 = vrot.lane.b32.xlu0 %v763, 55
      %v891 = vpop.permute.xlu0 %890
      %894 = vrot.lane.b32.xlu0 %v833, 54
      %v895 = vpop.permute.xlu0 %894
      %896 = vrot.lane.b32.xlu0 %v834, 54
      %v897 = vpop.permute.xlu0 %896
      %900 = vrot.lane.b32.xlu0 %v844, 48
      %v901 = vpop.permute.xlu0 %900
      %902 = vrot.lane.b32.xlu0 %v845, 48
      %v903 = vpop.permute.xlu0 %902
      %906 = vrot.lane.b32.xlu0 %v855, 47
      %v907 = vpop.permute.xlu0 %906
      %908 = vrot.lane.b32.xlu0 %v856, 47
      %v909 = vpop.permute.xlu0 %908
      %912 = vrot.lane.b32.xlu0 %v866, 46
      %v913 = vpop.permute.xlu0 %912
      %914 = vrot.lane.b32.xlu0 %v867, 46
      %v915 = vpop.permute.xlu0 %914
      %917 = vset.pattern.permute.xlu0 0
      %918 = vperm.xlu0 %917, %v766
      %v919 = vpop.permute.xlu0 %918
      %923 = vrot.lane.b32.xlu0 %v789, 73
      %v924 = vpop.permute.xlu0 %923
      %925 = vrot.lane.b32.xlu0 %v790, 73
      %v926 = vpop.permute.xlu0 %925
      %927 = vrot.lane.b32.xlu0 %v871, 73
      %v928 = vpop.permute.xlu0 %927
      %929 = vrot.lane.b32.xlu0 %v873, 73
      %v930 = vpop.permute.xlu0 %929
      %931 = vrot.lane.b32.xlu0 %v877, 73
      %v932 = vpop.permute.xlu0 %931
      %933 = vrot.lane.b32.xlu0 %v879, 73
      %v934 = vpop.permute.xlu0 %933
      %935 = vrot.lane.b32.xlu0 %v883, 73
      %v936 = vpop.permute.xlu0 %935
      %937 = vrot.lane.b32.xlu0 %v885, 73
      %v938 = vpop.permute.xlu0 %937
      %939 = vrot.lane.b32.xlu0 %v889, 73
      %v940 = vpop.permute.xlu0 %939
      %941 = vrot.lane.b32.xlu0 %v891, 73
      %v942 = vpop.permute.xlu0 %941
      %943 = vrot.lane.b32.xlu0 %v895, 73
      %v944 = vpop.permute.xlu0 %943
      %945 = vrot.lane.b32.xlu0 %v897, 73
      %v946 = vpop.permute.xlu0 %945
      %947 = vrot.lane.b32.xlu0 %v901, 73
      %v948 = vpop.permute.xlu0 %947
      %949 = vrot.lane.b32.xlu0 %v903, 73
      %v950 = vpop.permute.xlu0 %949
      %951 = vrot.lane.b32.xlu0 %v907, 73
      %v952 = vpop.permute.xlu0 %951
      %953 = vrot.lane.b32.xlu0 %v909, 73
      %v954 = vpop.permute.xlu0 %953
      %955 = vrot.lane.b32.xlu0 %v913, 73
      %v956 = vpop.permute.xlu0 %955
      %957 = vrot.lane.b32.xlu0 %v915, 73
      %v958 = vpop.permute.xlu0 %957
      %vm977 = vcmask 130048
      %v979 = vsel %vm977, %v765, 0
      %981 = vmatprep.subr.mxu0 0.0
      %982 = vmatpush1.msra.mxu0 %v954
      %983 = vmatprep.subr.mxu0 0.0
      %984 = vmatpush1.msra.mxu0 %v952
      %985 = vmatprep.subr.mxu0 0.0
      %986 = vmatpush1.msra.mxu0 %v950
      %987 = vmatprep.subr.mxu0 0.0
      %988 = vmatpush1.msra.mxu0 %v948
      %989 = vmatprep.subr.mxu0 0.0
      %990 = vmatpush1.msra.mxu0 %v946
      %991 = vmatprep.subr.mxu0 0.0
      %992 = vmatpush1.msra.mxu0 %v944
      %993 = vmatprep.subr.mxu0 0.0
      %994 = vmatpush1.msra.mxu0 %v942
      %995 = vmatprep.subr.mxu0 0.0
      %996 = vmatpush1.msra.mxu0 %v940
      %997 = vmatprep.subr.mxu0 0.0
      %998 = vmatpush1.msra.mxu0 %v938
      %999 = vmatprep.subr.mxu0 0.0
      %1000 = vmatpush1.msra.mxu0 %v936
      %1001 = vmatprep.subr.mxu0 0.0
      %1002 = vmatpush1.msra.mxu0 %v934
      %1003 = vmatprep.subr.mxu0 0.0
      %1004 = vmatpush1.msra.mxu0 %v932
      %1005 = vmatprep.subr.mxu0 0.0
      %1006 = vmatpush1.msra.mxu0 %v930
      %1007 = vmatprep.subr.mxu0 0.0
      %1008 = vmatpush1.msra.mxu0 %v928
      %1009 = vmatprep.subr.mxu0 0.0
      %1010 = vmatpush1.msra.mxu0 %v926
      %1011 = vmatprep.subr.mxu0 0.0
      %1012 = vmatpush1.msra.mxu0 %v924
      %1013 = vmatprep.subr.mxu0 0.0
      %1014 = vmatpush2.msra.mxu0 0.0
      %1015 = vmatprep.subr.mxu0 0.0
      %1016 = vmatpush2.msra.mxu0 0.0
      %1017 = vmatprep.subr.mxu0 0.0
      %1018 = vmatpush2.msra.mxu0 0.0
      %1019 = vmatprep.subr.mxu0 0.0
      %1020 = vmatpush2.msra.mxu0 0.0
      %1021 = vmatprep.subr.mxu0 0.0
      %1022 = vmatpush2.msra.mxu0 0.0
      %1023 = vmatprep.subr.mxu0 0.0
      %1024 = vmatpush2.msra.mxu0 0.0
      %1025 = vmatprep.subr.mxu0 0.0
      %1026 = vmatpush2.msra.mxu0 0.0
      %1027 = vmatprep.subr.mxu0 0.0
      %1028 = vmatpush2.msra.mxu0 0.0
      %1029 = vmatprep.subr.mxu0 0.0
      %1030 = vmatpush2.msra.mxu0 0.0
      %1031 = vmatprep.subr.mxu0 0.0
      %1032 = vmatpush2.msra.mxu0 0.0
      %1033 = vmatprep.subr.mxu0 0.0
      %1034 = vmatpush2.msra.mxu0 0.0
      %1035 = vmatprep.subr.mxu0 0.0
      %1036 = vmatpush2.msra.mxu0 0.0
      %1037 = vmatprep.subr.mxu0 0.0
      %1038 = vmatpush2.msra.mxu0 0.0
      %1039 = vmatprep.subr.mxu0 0.0
      %1040 = vmatpush2.msra.mxu0 0.0
      %1041 = vmatprep.subr.mxu0 0.0
      %1042 = vmatpush2.msra.mxu0 %v958
      %1043 = vmatprep.subr.mxu0 0.0
      %1044 = vmatpush2.msra.mxu0 %v956
      %1045 = vmatprep.mubr.f32.mxu0 %v979
      %1046 = vmatmul.mubr.f32.gmra.mxu0 %v764
      %v1047 = vpop.f32.mrf.mxu0
      %v1048 = vadd.f32 %v919, %v1047
      %v1049 = vpop.f32.mrf.mxu0
      %1050 = vdwg.mxu0
      %v1051 = vmax.f32 %v1048, 0.0
      %v1052 = vld [vmem:[%s8] sm:$0xff]
      %v1053 = vld [vmem:[%s9] sm:$0xff]
      %1054 = vrot.lane.b32.xlu0 %v1051, 64
      %v1055 = vpop.permute.xlu0 %1054
      %v1056 = vsel %vm767, %v1055, %v1051
      %1057 = vrot.lane.b32.xlu0 %v1056, 64
      %v1058 = vpop.permute.xlu0 %1057
      %v1059 = vsel %vm767, %v1058, %v1051
      %v1060 = vmul.f32 %v1059, %v787
      %v1061 = vmul.f32 %v1059, %v798
      %v1062 = vmul.f32 %v1059, %v809
      %v1063 = vmul.f32 %v1059, %v820
      %v1064 = vmul.f32 %v1059, %v831
      %v1065 = vmul.f32 %v1059, %v842
      %v1066 = vmul.f32 %v1059, %v853
      %v1067 = vmul.f32 %v1059, %v864
      %1069 = vrot.lane.b32.xlu0 %v1061, 127
      %v1070 = vpop.permute.xlu0 %1069
      %1072 = vrot.lane.b32.xlu0 %v1062, 126
      %v1073 = vpop.permute.xlu0 %1072
      %1075 = vrot.lane.b32.xlu0 %v1063, 120
      %v1076 = vpop.permute.xlu0 %1075
      %1078 = vrot.lane.b32.xlu0 %v1051, 55
      %v1079 = vpop.permute.xlu0 %1078
      %1081 = vrot.lane.b32.xlu0 %v1064, 54
      %v1082 = vpop.permute.xlu0 %1081
      %1084 = vrot.lane.b32.xlu0 %v1065, 48
      %v1085 = vpop.permute.xlu0 %1084
      %1087 = vrot.lane.b32.xlu0 %v1066, 47
      %v1088 = vpop.permute.xlu0 %1087
      %1090 = vrot.lane.b32.xlu0 %v1067, 46
      %v1091 = vpop.permute.xlu0 %1090
      %1093 = vset.pattern.permute.xlu0 0
      %1094 = vperm.xlu0 %1093, %v1053
      %v1095 = vpop.permute.xlu0 %1094
      %1098 = vrot.lane.b32.xlu0 %v1060, 73
      %v1099 = vpop.permute.xlu0 %1098
      %1100 = vrot.lane.b32.xlu0 %v1070, 73
      %v1101 = vpop.permute.xlu0 %1100
      %1102 = vrot.lane.b32.xlu0 %v1073, 73
      %v1103 = vpop.permute.xlu0 %1102
      %1104 = vrot.lane.b32.xlu0 %v1076, 73
      %v1105 = vpop.permute.xlu0 %1104
      %1106 = vrot.lane.b32.xlu0 %v1079, 73
      %v1107 = vpop.permute.xlu0 %1106
      %1108 = vrot.lane.b32.xlu0 %v1082, 73
      %v1109 = vpop.permute.xlu0 %1108
      %1110 = vrot.lane.b32.xlu0 %v1085, 73
      %v1111 = vpop.permute.xlu0 %1110
      %1112 = vrot.lane.b32.xlu0 %v1088, 73
      %v1113 = vpop.permute.xlu0 %1112
      %1114 = vrot.lane.b32.xlu0 %v1091, 73
      %v1115 = vpop.permute.xlu0 %1114
      %v1126 = vsel %vm685, %v1052, 0
      %1128 = vmatprep.subr.mxu0 0.0
      %1129 = vmatpush1.msra.mxu0 0.0
      %1130 = vmatprep.subr.mxu0 0.0
      %1131 = vmatpush1.msra.mxu0 0.0
      %1132 = vmatprep.subr.mxu0 0.0
      %1133 = vmatpush1.msra.mxu0 0.0
      %1134 = vmatprep.subr.mxu0 0.0
      %1135 = vmatpush1.msra.mxu0 0.0
      %1136 = vmatprep.subr.mxu0 0.0
      %1137 = vmatpush1.msra.mxu0 0.0
      %1138 = vmatprep.subr.mxu0 0.0
      %1139 = vmatpush1.msra.mxu0 0.0
      %1140 = vmatprep.subr.mxu0 0.0
      %1141 = vmatpush1.msra.mxu0 0.0
      %1142 = vmatprep.subr.mxu0 0.0
      %1143 = vmatpush1.msra.mxu0 %v1115
      %1144 = vmatprep.subr.mxu0 0.0
      %1145 = vmatpush1.msra.mxu0 %v1113
      %1146 = vmatprep.subr.mxu0 0.0
      %1147 = vmatpush1.msra.mxu0 %v1111
      %1148 = vmatprep.subr.mxu0 0.0
      %1149 = vmatpush1.msra.mxu0 %v1109
      %1150 = vmatprep.subr.mxu0 0.0
      %1151 = vmatpush1.msra.mxu0 %v1107
      %1152 = vmatprep.subr.mxu0 0.0
      %1153 = vmatpush1.msra.mxu0 %v1105
      %1154 = vmatprep.subr.mxu0 0.0
      %1155 = vmatpush1.msra.mxu0 %v1103
      %1156 = vmatprep.subr.mxu0 0.0
      %1157 = vmatpush1.msra.mxu0 %v1101
      %1158 = vmatprep.subr.mxu0 0.0
      %1159 = vmatpush1.msra.mxu0 %v1099
      %1160 = vmatprep.subr.mxu0 0.0
      %1161 = vmatpush2.msra.mxu0 0.0
      %1162 = vmatprep.subr.mxu0 0.0
      %1163 = vmatpush2.msra.mxu0 0.0
      %1164 = vmatprep.subr.mxu0 0.0
      %1165 = vmatpush2.msra.mxu0 0.0
      %1166 = vmatprep.subr.mxu0 0.0
      %1167 = vmatpush2.msra.mxu0 0.0
      %1168 = vmatprep.subr.mxu0 0.0
      %1169 = vmatpush2.msra.mxu0 0.0
      %1170 = vmatprep.subr.mxu0 0.0
      %1171 = vmatpush2.msra.mxu0 0.0
      %1172 = vmatprep.subr.mxu0 0.0
      %1173 = vmatpush2.msra.mxu0 0.0
      %1174 = vmatprep.subr.mxu0 0.0
      %1175 = vmatpush2.msra.mxu0 0.0
      %1176 = vmatprep.subr.mxu0 0.0
      %1177 = vmatpush2.msra.mxu0 0.0
      %1178 = vmatprep.subr.mxu0 0.0
      %1179 = vmatpush2.msra.mxu0 0.0
      %1180 = vmatprep.subr.mxu0 0.0
      %1181 = vmatpush2.msra.mxu0 0.0
      %1182 = vmatprep.subr.mxu0 0.0
      %1183 = vmatpush2.msra.mxu0 0.0
      %1184 = vmatprep.subr.mxu0 0.0
      %1185 = vmatpush2.msra.mxu0 0.0
      %1186 = vmatprep.subr.mxu0 0.0
      %1187 = vmatpush2.msra.mxu0 0.0
      %1188 = vmatprep.subr.mxu0 0.0
      %1189 = vmatpush2.msra.mxu0 0.0
      %1190 = vmatprep.subr.mxu0 0.0
      %1191 = vmatpush2.msra.mxu0 0.0
      %1192 = vmatprep.mubr.f32.mxu0 0.0
      %1193 = vmatmul.mubr.f32.gmra.mxu0 %v1126
      %v1194 = vpop.f32.mrf.mxu0
      %v1195 = vadd.f32 %v1095, %v1194
      %v1196 = vpop.f32.mrf.mxu0
      %1197 = vdwg.mxu0
      %v1198 = vmax.f32 %v1195, 0.0
      %v1199 = vld [vmem:[%s10] sm:$0xf]
      %v1200 = vld [vmem:[%s11] sm:$0xf]
      %1202 = vset.pattern.permute.xlu0 0
      %1203 = vperm.xlu0 %1202, %v1200
      %v1204 = vpop.permute.xlu0 %1203
      %vm1206 = vcmask 64512
      %v1208 = vsel %vm1206, %v1199, 0
      %1210 = vmatprep.subr.mxu0 0.0
      %1211 = vmatpush1.msra.mxu0 0.0
      %1212 = vmatprep.subr.mxu0 0.0
      %1213 = vmatpush1.msra.mxu0 0.0
      %1214 = vmatprep.subr.mxu0 0.0
      %1215 = vmatpush1.msra.mxu0 0.0
      %1216 = vmatprep.subr.mxu0 0.0
      %1217 = vmatpush1.msra.mxu0 0.0
      %1218 = vmatprep.subr.mxu0 0.0
      %1219 = vmatpush1.msra.mxu0 0.0
      %1220 = vmatprep.subr.mxu0 0.0
      %1221 = vmatpush1.msra.mxu0 0.0
      %1222 = vmatprep.subr.mxu0 0.0
      %1223 = vmatpush1.msra.mxu0 0.0
      %1224 = vmatprep.subr.mxu0 0.0
      %1225 = vmatpush1.msra.mxu0 0.0
      %1226 = vmatprep.subr.mxu0 0.0
      %1227 = vmatpush1.msra.mxu0 0.0
      %1228 = vmatprep.subr.mxu0 0.0
      %1229 = vmatpush1.msra.mxu0 0.0
      %1230 = vmatprep.subr.mxu0 0.0
      %1231 = vmatpush1.msra.mxu0 0.0
      %1232 = vmatprep.subr.mxu0 0.0
      %1233 = vmatpush1.msra.mxu0 0.0
      %1234 = vmatprep.subr.mxu0 0.0
      %1235 = vmatpush1.msra.mxu0 0.0
      %1236 = vmatprep.subr.mxu0 0.0
      %1237 = vmatpush1.msra.mxu0 0.0
      %1238 = vmatprep.subr.mxu0 0.0
      %1239 = vmatpush1.msra.mxu0 0.0
      %1240 = vmatprep.subr.mxu0 0.0
      %1241 = vmatpush1.msra.mxu0 %v1198
      %1242 = vmatprep.subr.mxu0 0.0
      %1243 = vmatpush2.msra.mxu0 0.0
      %1244 = vmatprep.subr.mxu0 0.0
      %1245 = vmatpush2.msra.mxu0 0.0
      %1246 = vmatprep.subr.mxu0 0.0
      %1247 = vmatpush2.msra.mxu0 0.0
      %1248 = vmatprep.subr.mxu0 0.0
      %1249 = vmatpush2.msra.mxu0 0.0
      %1250 = vmatprep.subr.mxu0 0.0
      %1251 = vmatpush2.msra.mxu0 0.0
      %1252 = vmatprep.subr.mxu0 0.0
      %1253 = vmatpush2.msra.mxu0 0.0
      %1254 = vmatprep.subr.mxu0 0.0
      %1255 = vmatpush2.msra.mxu0 0.0
      %1256 = vmatprep.subr.mxu0 0.0
      %1257 = vmatpush2.msra.mxu0 0.0
      %1258 = vmatprep.subr.mxu0 0.0
      %1259 = vmatpush2.msra.mxu0 0.0
      %1260 = vmatprep.subr.mxu0 0.0
      %1261 = vmatpush2.msra.mxu0 0.0
      %1262 = vmatprep.subr.mxu0 0.0
      %1263 = vmatpush2.msra.mxu0 0.0
      %1264 = vmatprep.subr.mxu0 0.0
      %1265 = vmatpush2.msra.mxu0 0.0
      %1266 = vmatprep.subr.mxu0 0.0
      %1267 = vmatpush2.msra.mxu0 0.0
      %1268 = vmatprep.subr.mxu0 0.0
      %1269 = vmatpush2.msra.mxu0 0.0
      %1270 = vmatprep.subr.mxu0 0.0
      %1271 = vmatpush2.msra.mxu0 0.0
      %1272 = vmatprep.subr.mxu0 0.0
      %1273 = vmatpush2.msra.mxu0 0.0
      %1274 = vmatprep.mubr.f32.mxu0 0.0
      %1275 = vmatmul.mubr.f32.gmra.mxu0 %v1208
      %v1276 = vpop.f32.mrf.mxu0
      %v1277 = vadd.f32 %v1204, %v1276
      %v1278 = vpop.f32.mrf.mxu0
      %1279 = vdwg.mxu0
      %vm1280 = vcmask 519168
      %1281 = vst.msk [vmem:[%s498] sm:$0xf] %vm1280, %v1277
      %v1282 = vld [vmem:[%s12] sm:$0xff]
      %v1283 = vld [vmem:[%s12 + $0x8] sm:$0xff]
      %v1284 = vld [vmem:[%s12 + $0x10] sm:$0xff]
      %v1285 = vld [vmem:[%s12 + $0x18] sm:$0xff]
      %v1286 = vld [vmem:[%s12 + $0x20] sm:$0xff]
      %v1287 = vld [vmem:[%s12 + $0x28] sm:$0xff]
      %v1288 = vld [vmem:[%s12 + $0x30] sm:$0xff]
      %v1289 = vld [vmem:[%s12 + $0x38] sm:$0xff]
      %v1290 = vld [vmem:[%s12 + $0x40] sm:$0xff]
      %v1291 = vld [vmem:[%s12 + $0x48] sm:$0xff]
      %v1292 = vld [vmem:[%s12 + $0x50] sm:$0xff]
      %v1293 = vld [vmem:[%s12 + $0x58] sm:$0xff]
      %v1294 = vld [vmem:[%s12 + $0x60] sm:$0xff]
      %v1295 = vld [vmem:[%s12 + $0x68] sm:$0xff]
      %v1296 = vld [vmem:[%s12 + $0x70] sm:$0xff]
      %v1297 = vld [vmem:[%s12 + $0x78] sm:$0xff]
      %vm1298 = vcmask 523264
      %v1300 = vsel %vm1298, %v1198, 0
      %1302 = vmatprep.subr.mxu0 0.0
      %1303 = vmatpush1.msra.mxu0 0.0
      %1304 = vmatprep.subr.mxu0 0.0
      %1305 = vmatpush1.msra.mxu0 0.0
      %1306 = vmatprep.subr.mxu0 0.0
      %1307 = vmatpush1.msra.mxu0 0.0
      %1308 = vmatprep.subr.mxu0 0.0
      %1309 = vmatpush1.msra.mxu0 0.0
      %1310 = vmatprep.subr.mxu0 0.0
      %1311 = vmatpush1.msra.mxu0 0.0
      %1312 = vmatprep.subr.mxu0 0.0
      %1313 = vmatpush1.msra.mxu0 0.0
      %1314 = vmatprep.subr.mxu0 0.0
      %1315 = vmatpush1.msra.mxu0 0.0
      %1316 = vmatprep.subr.mxu0 0.0
      %1317 = vmatpush1.msra.mxu0 0.0
      %1318 = vmatprep.subr.mxu0 %v1297
      %1319 = vmatpush1.msra.mxu0 %v1296
      %1320 = vmatprep.subr.mxu0 %v1295
      %1321 = vmatpush1.msra.mxu0 %v1294
      %1322 = vmatprep.subr.mxu0 %v1293
      %1323 = vmatpush1.msra.mxu0 %v1292
      %1324 = vmatprep.subr.mxu0 %v1291
      %1325 = vmatpush1.msra.mxu0 %v1290
      %1326 = vmatprep.subr.mxu0 %v1289
      %1327 = vmatpush1.msra.mxu0 %v1288
      %1328 = vmatprep.subr.mxu0 %v1287
      %1329 = vmatpush1.msra.mxu0 %v1286
      %1330 = vmatprep.subr.mxu0 %v1285
      %1331 = vmatpush1.msra.mxu0 %v1284
      %1332 = vmatprep.subr.mxu0 %v1283
      %1333 = vmatpush1.msra.mxu0 %v1282
      %1334 = vmatprep.subr.mxu0 0.0
      %1335 = vmatpush2.msra.mxu0 0.0
      %1336 = vmatprep.subr.mxu0 0.0
      %1337 = vmatpush2.msra.mxu0 0.0
      %1338 = vmatprep.subr.mxu0 0.0
      %1339 = vmatpush2.msra.mxu0 0.0
      %1340 = vmatprep.subr.mxu0 0.0
      %1341 = vmatpush2.msra.mxu0 0.0
      %1342 = vmatprep.subr.mxu0 0.0
      %1343 = vmatpush2.msra.mxu0 0.0
      %1344 = vmatprep.subr.mxu0 0.0
      %1345 = vmatpush2.msra.mxu0 0.0
      %1346 = vmatprep.subr.mxu0 0.0
      %1347 = vmatpush2.msra.mxu0 0.0
      %1348 = vmatprep.subr.mxu0 0.0
      %1349 = vmatpush2.msra.mxu0 0.0
      %1350 = vmatprep.subr.mxu0 0.0
      %1351 = vmatpush2.msra.mxu0 0.0
      %1352 = vmatprep.subr.mxu0 0.0
      %1353 = vmatpush2.msra.mxu0 0.0
      %1354 = vmatprep.subr.mxu0 0.0
      %1355 = vmatpush2.msra.mxu0 0.0
      %1356 = vmatprep.subr.mxu0 0.0
      %1357 = vmatpush2.msra.mxu0 0.0
      %1358 = vmatprep.subr.mxu0 0.0
      %1359 = vmatpush2.msra.mxu0 0.0
      %1360 = vmatprep.subr.mxu0 0.0
      %1361 = vmatpush2.msra.mxu0 0.0
      %1362 = vmatprep.subr.mxu0 0.0
      %1363 = vmatpush2.msra.mxu0 0.0
      %1364 = vmatprep.subr.mxu0 0.0
      %1365 = vmatpush2.msra.mxu0 0.0
      %1366 = vmatprep.mubr.f32.mxu0 0.0
      %1367 = vmatmul.mubr.f32.gmra.mxu0 %v1300
      %v1368 = vpop.f32.mrf.mxu0
      %v1369 = vadd.f32 %v760, %v1368
      %v1370 = vpop.f32.mrf.mxu0
      %v1371 = vadd.f32 %v761, %v1370
      %1372 = vdwg.mxu0
      %1373 = vst [vmem:[%s494] sm:$0xff] %v1369
      %1374 = vst [vmem:[%s494 + $0x8] sm:$0xff] %v1371
      %p1375 = scmp.lt.s32.totalorder %s26, 1
      %s1376 = scalar_select %p1375, %s26, 1
      %s1377 = smul.addr %s1376, 2
      %s1378 = smul.addr %s1377, 8
      %s1379 = scalar_lea.vmem %s13, %s1378
      %p1380 = scmp.lt.s32.totalorder %s26, 1
      %s1381 = scalar_select %p1380, %s26, 1
      %s1382 = smul.addr %s1381, 4
      %s1383 = scalar_lea.vmem %s14, %s1382
      // Predicated region
      $region73: #{sffm_forward.1} parent=71 // pred_check
        %p1384 = pneg %p327
      $region74: #{sffm_forward.1} parent=71 // pred_check_branch
        %1386 = sbr.rel (%p1384) target = $region76
      $region75: #{sffm_forward.1} parent=71 // pred_region
        _
      $region76: #{sffm_forward.1} parent=71 // pred_fallthru
        _
      // Predicated region
      $region77: #{sffm_forward.1} parent=71 // pred_check
        %p1387 = pneg %p353
      $region78: #{sffm_forward.1} parent=71 // pred_check_branch
        %1389 = sbr.rel (%p1387) target = $region80
      $region79: #{sffm_forward.1} parent=71 // pred_region
        _
      $region80: #{sffm_forward.1} parent=71 // pred_fallthru
        _
    $region72: #{sffm_forward.1} parent=5 // pred_fallthru
      _
    %p1390 = scmp.le.s32.totalorder 2, %s21
    // Predicated region
    $region81: #{sffm_forward.1} parent=5 // pred_check
      %p1391 = pneg %p1390
    $region82: #{sffm_forward.1} parent=5 // pred_check_branch
      %1393 = sbr.rel (%p1391) target = $region84
    $region83: #{sffm_forward.1} parent=5 // pred_region
      %s1394 = ssub.s32 %s21, 2
      // Predicated region
      $region85: #{sffm_forward.1} parent=83 // pred_check
        %p1395 = pneg %p333
      $region86: #{sffm_forward.1} parent=83 // pred_check_branch
        %1397 = sbr.rel (%p1395) target = $region88
      $region87: #{sffm_forward.1} parent=83 // pred_region
        %p1398 = scmp.lt.s32.totalorder %s27, 1
        %s1399 = scalar_select %p1398, %s27, 1
        %s1400 = smul.addr %s1399, 2
        %s1401 = smul.addr %s1400, 8
        %s1402 = scalar_lea.vmem %s13, %s1401
      $region88: #{sffm_forward.1} parent=83 // pred_fallthru
        _
      // Predicated region
      $region89: #{sffm_forward.1} parent=83 // pred_check
        %p1403 = pneg %p359
      $region90: #{sffm_forward.1} parent=83 // pred_check_branch
        %1405 = sbr.rel (%p1403) target = $region92
      $region91: #{sffm_forward.1} parent=83 // pred_region
        %p1406 = scmp.lt.s32.totalorder %s27, 1
        %s1407 = scalar_select %p1406, %s27, 1
        %s1408 = smul.addr %s1407, 4
        %s1409 = scalar_lea.vmem %s14, %s1408
      $region92: #{sffm_forward.1} parent=83 // pred_fallthru
        _
    $region84: #{sffm_forward.1} parent=5 // pred_fallthru
      _
  $region6: #{sffm_forward.1} parent=0 // loop_footer
    %s25 = sadd.s32 1, %s21
  $region7: #{sffm_forward.1} parent=0 // loop_footer_branch
    %20 = sbr.rel target = $region3
  $region8: #{sffm_forward.1} parent=0 // loop_exit
    _

</llo_original>
